<compile_context>
chip_gen: v5e
topology: v5e:2x2
jax: 0.10.0
libtpu: 0.0.40
codegen_flags: <defaults>
</compile_context>

<pallas_src>
import numpy as np
import jax
import jax.numpy as jnp
from jax.experimental import pallas as pl
from jax.experimental.pallas import tpu as pltpu

F32 = jnp.float32
BF16 = jnp.bfloat16
NEG_INF = -1e12


# ----------------------------- Pallas kernels -----------------------------

def make_encoder_kernel(B, S, H, heads, L, eps=1e-7):
    """Whole (simplified) DeBERTa-style encoder in one kernel.

    B, S, heads, L are tiny and static, so per-(batch, head) attention uses
    small unrolled Python loops of pure 2-D matmuls (no in-kernel reshapes).
    """
    # TODO(synk): DeBERTa disentangled (content<->relative-position) attention
    # and pretrained weights are not reproduced; standard softmax self-attention
    # with learned absolute position embeddings is used instead.
    Dh = H // heads
    scale = 1.0 / float(Dh) ** 0.5

    def ln(x, g, b):
        mu = jnp.mean(x, axis=-1, keepdims=True)
        var = jnp.mean((x - mu) ** 2, axis=-1, keepdims=True)
        return (x - mu) * jax.lax.rsqrt(var + eps) * g + b

    def kernel(x_ref, bias_ref, mmat_ref, gmat_ref, eg_ref, eb_ref,
               wqkv_ref, bqkv_ref, wo_ref, bo_ref, ln1g_ref, ln1b_ref,
               w1_ref, b1_ref, w2_ref, b2_ref, ln2g_ref, ln2b_ref,
               enc_ref, prob_ref, nums_ref, attn_scr):
        x = ln(x_ref[...], eg_ref[...], eb_ref[...])                       # [B*S,H]
        for l in range(L):
            qkv = jnp.dot(x.astype(BF16), wqkv_ref[l],
                          preferred_element_type=F32) + bqkv_ref[l]        # [B*S,3H]
            for b in range(B):
                brow = bias_ref[b:b + 1, :]                                # [1,S]
                for h in range(heads):
                    q = qkv[b * S:(b + 1) * S, h * Dh:(h + 1) * Dh]
                    k = qkv[b * S:(b + 1) * S, H + h * Dh:H + (h + 1) * Dh]
                    v = qkv[b * S:(b + 1) * S, 2 * H + h * Dh:2 * H + (h + 1) * Dh]
                    s = jnp.einsum('qd,kd->qk', q.astype(BF16), k.astype(BF16),
                                   preferred_element_type=F32) * scale + brow
                    s = s - jnp.max(s, axis=-1, keepdims=True)
                    p = jnp.exp(s)
                    p = p / jnp.sum(p, axis=-1, keepdims=True)
                    attn_scr[b * S:(b + 1) * S, h * Dh:(h + 1) * Dh] = jnp.dot(
                        p.astype(BF16), v.astype(BF16), preferred_element_type=F32)
            a = jnp.dot(attn_scr[...].astype(BF16), wo_ref[l],
                        preferred_element_type=F32) + bo_ref[l]
            x = ln(x + a, ln1g_ref[l], ln1b_ref[l])
            hmid = jax.nn.gelu(jnp.dot(x.astype(BF16), w1_ref[l],
                                       preferred_element_type=F32) + b1_ref[l])
            f = jnp.dot(hmid.astype(BF16), w2_ref[l],
                        preferred_element_type=F32) + b2_ref[l]
            x = ln(x + f, ln2g_ref[l], ln2b_ref[l])
        enc_ref[...] = x
        # masked mean (problem repr) and number-position gather as matmuls
        prob_ref[...] = jnp.dot(mmat_ref[...], x, preferred_element_type=F32)
        nums_ref[...] = jnp.dot(gmat_ref[...], x, preferred_element_type=F32)

    return kernel


def _prep_kernel(enc_ref, embf_ref, wk_ref, wn_ref, embp_ref, enckp_ref):
    """Loop-invariant decoder projections, computed once."""
    embp_ref[...] = jnp.dot(embf_ref[...].astype(BF16), wn_ref[...],
                            preferred_element_type=F32)
    enckp_ref[...] = jnp.dot(enc_ref[...].astype(BF16), wk_ref[...],
                             preferred_element_type=F32)


def make_step_kernel(B, S, H, E, O, op_nums, out_w):
    """One fused GTS decoder timestep (Prediction + GenerateNode), batched over B.

    Output layout (lane-dense [B, out_w=128] slab):
      [0:H)        left child
      [H:2H)       right child
      [2H:2H+E)    op-label embedding
      [2H+E:2H+E+op_nums)  operator scores
    Number scores come out as a separate [B*O, 1] column (reshaped on host).
    """
    def kernel(cur_ref, left_ref, hasl_ref, gen1h_ref,
               enc_ref, enckp_ref, embp_ref, padm_ref, numm_ref,
               wl_ref, bl_ref, wr_ref, br_ref,
               awq_ref, ab_ref, av_ref, avb_ref,
               swl_ref, sb_ref, sv_ref, svb_ref,
               opsw_ref, opsb_ref, opemb_ref, wgen_ref, bgen_ref,
               out_ref, numsc_ref, ctx_scr):
        out_ref[...] = jnp.zeros_like(out_ref)
        cur_b = cur_ref[...].astype(BF16)
        left_b = left_ref[...].astype(BF16)

        # gated node embedding: compute both (left absent / present) branches
        # on the full batch, then select per row (replaces B per-example calls).
        hl = jnp.dot(cur_b, wl_ref[...], preferred_element_type=F32) + bl_ref[...]
        gl = jnp.tanh(hl[:, :H]) * jax.nn.sigmoid(hl[:, H:])
        hr = (jnp.dot(left_b, wr_ref[:H, :], preferred_element_type=F32) +
              jnp.dot(cur_b, wr_ref[H:, :], preferred_element_type=F32) + br_ref[...])
        gr = jnp.tanh(hr[:, :H]) * jax.nn.sigmoid(hr[:, H:])
        node = jnp.where(hasl_ref[...] > 0.0, gr, gl)                      # [B,H]
        node_b = node.astype(BF16)

        # tree attention over encoder outputs (enc @ attn_wk hoisted to prep)
        qp = jnp.dot(node_b, awq_ref[...], preferred_element_type=F32)     # [B,H]
        kp = enckp_ref[...]                                                # [B*S,H]
        enc = enc_ref[...]
        for b in range(B):                                                 # B tiny, static
            feat = jnp.tanh(qp[b:b + 1, :] + kp[b * S:(b + 1) * S, :] + ab_ref[...])
            e = jnp.sum(feat * av_ref[...], axis=-1, keepdims=True) + avb_ref[...]
            e = jnp.where(padm_ref[b * S:(b + 1) * S, :] > 0.0, NEG_INF, e)
            e = e - jnp.max(e, axis=0, keepdims=True)
            p = jnp.exp(e)
            p = p / jnp.sum(p, axis=0, keepdims=True)                      # [S,1]
            ctx_scr[b:b + 1, :] = jnp.sum(p * enc[b * S:(b + 1) * S, :],
                                          axis=0, keepdims=True)
        ctx = ctx_scr[...]                                                 # [B,H]
        ctx_b = ctx.astype(BF16)

        # operator scores  (leaf = [node | context], weight split to skip concat)
        ops = (jnp.dot(node_b, opsw_ref[:H, :], preferred_element_type=F32) +
               jnp.dot(ctx_b, opsw_ref[H:, :], preferred_element_type=F32) +
               opsb_ref[...])
        out_ref[:, 2 * H + E:2 * H + E + op_nums] = ops

        # number scores (embedding projection hoisted to prep kernel)
        lp = (jnp.dot(node_b, swl_ref[:H, :], preferred_element_type=F32) +
              jnp.dot(ctx_b, swl_ref[H:, :], preferred_element_type=F32))  # [B,H]
        ep = embp_ref[...]                                                 # [B*O,H]
        for b in range(B):
            feat = jnp.tanh(lp[b:b + 1, :] + ep[b * O:(b + 1) * O, :] + sb_ref[...])
            sc = jnp.sum(feat * sv_ref[...], axis=-1, keepdims=True) + svb_ref[...]
            numsc_ref[b * O:(b + 1) * O, :] = jnp.where(
                numm_ref[b * O:(b + 1) * O, :] > 0.0, NEG_INF, sc)

        # generate node: op-label embedding + left/right children (gated pairs)
        label = jnp.dot(gen1h_ref[...], opemb_ref[...], preferred_element_type=F32)
        hg = (jnp.dot(node_b, wgen_ref[:H, :], preferred_element_type=F32) +
              jnp.dot(ctx_b, wgen_ref[H:2 * H, :], preferred_element_type=F32) +
              jnp.dot(label.astype(BF16), wgen_ref[2 * H:, :],
                      preferred_element_type=F32) + bgen_ref[...])          # [B,4H]
        out_ref[:, 0:H] = jnp.tanh(hg[:, :H]) * jax.nn.sigmoid(hg[:, H:2 * H])
        out_ref[:, H:2 * H] = (jnp.tanh(hg[:, 2 * H:3 * H]) *
                               jax.nn.sigmoid(hg[:, 3 * H:]))
        out_ref[:, 2 * H:2 * H + E] = label

    return kernel


def make_merge_kernel(H, E):
    # Data-dependent (stack-driven) subtree merge; called only when needed.
    def kernel(op_ref, s1_ref, s2_ref, w_ref, b_ref, o_ref):
        h = (jnp.dot(op_ref[...].astype(BF16), w_ref[:E, :],
                     preferred_element_type=F32) +
             jnp.dot(s1_ref[...].astype(BF16), w_ref[E:E + H, :],
                     preferred_element_type=F32) +
             jnp.dot(s2_ref[...].astype(BF16), w_ref[E + H:, :],
                     preferred_element_type=F32) + b_ref[...])
        o_ref[...] = jnp.tanh(h[:, :H]) * jax.nn.sigmoid(h[:, H:])
    return kernel


# ----------------------------- host-side tree structures -------------------

class TreeNode:
    def __init__(self, embedding, left_flag=False):
        self.embedding = embedding
        self.left_flag = left_flag


class TreeEmbedding:
    def __init__(self, embedding, terminal=False):
        self.embedding = embedding
        self.terminal = terminal


# ----------------------------- parameter preparation -----------------------

def prepare_encoder_params(ep, cfg):
    L = cfg['num_layers']

    def stack(key):
        return jnp.stack([ep['layers'][l][key] for l in range(L)], axis=0)

    def stack_row(key):
        return stack(key).reshape(L, 1, -1).astype(F32)

    return {
        'word_emb': ep['word_emb'],
        'pos_emb': ep['pos_emb'],
        'eg': ep['emb_ln_g'].reshape(1, -1),
        'eb': ep['emb_ln_b'].reshape(1, -1),
        'wqkv': stack('wqkv').astype(BF16), 'bqkv': stack_row('bqkv'),
        'wo': stack('wo').astype(BF16), 'bo': stack_row('bo'),
        'ln1g': stack_row('ln1_g'), 'ln1b': stack_row('ln1_b'),
        'w1': stack('w1').astype(BF16), 'b1': stack_row('b1'),
        'w2': stack('w2').astype(BF16), 'b2': stack_row('b2'),
        'ln2g': stack_row('ln2_g'), 'ln2b': stack_row('ln2_b'),
    }


def prepare_decoder_params(dp):
    def wpair(w, wg):
        return jnp.concatenate([w, wg], axis=1).astype(BF16)

    def bpair(b, bg):
        return jnp.concatenate([b, bg]).reshape(1, -1).astype(F32)

    return {
        'wl': wpair(dp['concat_l_w'], dp['concat_lg_w']),
        'bl': bpair(dp['concat_l_b'], dp['concat_lg_b']),
        'wr': wpair(dp['concat_r_w'], dp['concat_rg_w']),
        'br': bpair(dp['concat_r_b'], dp['concat_rg_b']),
        'awq': dp['attn_wq'].astype(BF16),
        'awk': dp['attn_wk'].astype(BF16),
        'ab': dp['attn_b'].reshape(1, -1),
        'av': dp['attn_v'].reshape(1, -1),
        'avb': dp['attn_vb'].reshape(1, 1),
        'swl': dp['score_wl'].astype(BF16),
        'swn': dp['score_wn'].astype(BF16),
        'sb': dp['score_b'].reshape(1, -1),
        'sv': dp['score_v'].reshape(1, -1),
        'svb': dp['score_vb'].reshape(1, 1),
        'opsw': dp['ops_w'].astype(BF16),
        'opsb': dp['ops_b'].reshape(1, -1),
        'opemb': dp['op_emb'].astype(F32),
        'wgen': jnp.concatenate([dp['gen_l_w'], dp['gen_lg_w'],
                                 dp['gen_r_w'], dp['gen_rg_w']],
                                axis=1).astype(BF16),
        'bgen': jnp.concatenate([dp['gen_l_b'], dp['gen_lg_b'],
                                 dp['gen_r_b'], dp['gen_rg_b']]).reshape(1, -1),
        'mergew': jnp.concatenate([dp['merge_w'], dp['merge_g_w']],
                                  axis=1).astype(BF16),
        'mergeb': jnp.concatenate([dp['merge_b'], dp['merge_g_b']]).reshape(1, -1),
        'genemb': dp['embedding_weight'][0],          # [Gs, H]
    }


# ----------------------------- full forward ---------------------------------

def mwp_deberta_forward(params, cfg, seq_np, seq_length, nums_stack, num_size,
                        num_pos, target):
    B, S = seq_np.shape
    H = cfg['hidden_size']
    E = cfg['embedding_size']
    heads = cfg['num_heads']
    L = cfg['num_layers']
    Gs = cfg['generate_size']
    op_nums = cfg['operator_nums']
    num_start = cfg['num_start']
    unk = cfg['unk_token']
    pad = cfg['in_pad_token']

    Ncopy = max(len(p) for p in num_pos)
    assert max(num_size) == Ncopy
    O = Gs + Ncopy
    out_size = op_nums + O
    OUT_W = 128
    assert 2 * H + E + op_nums <= OUT_W

    # ---- loop-invariant host-built constants (built once) ----
    bias_np = np.where(seq_np != pad, 0.0, -1e9).astype(np.float32)          # [B,S]
    padm_np = (seq_np == pad).astype(np.float32).reshape(B * S, 1)           # [B*S,1]
    M_np = np.zeros((B, B * S), np.float32)                                  # masked mean
    for b in range(B):
        ln_b = max(int(seq_length[b]), 1)
        M_np[b, b * S:b * S + ln_b] = 1.0 / ln_b
    G_np = np.zeros((B * Ncopy, B * S), np.float32)                          # num gather
    for b in range(B):
        for j, p_ in enumerate(num_pos[b]):
            G_np[b * Ncopy + j, b * S + p_] = 1.0
    numm_np = np.zeros((B, O), np.float32)                                   # num mask
    for b in range(B):
        numm_np[b, num_size[b] + Gs:] = 1.0
    numm_np = numm_np.reshape(B * O, 1)

    eprep = prepare_encoder_params(params['encoder'], cfg)
    dprep = prepare_decoder_params(params['decoder'])

    enc_kernel = make_encoder_kernel(B, S, H, heads, L)
    step_kernel = make_step_kernel(B, S, H, E, O, op_nums, OUT_W)
    merge_kernel = make_merge_kernel(H, E)

    @jax.jit
    def encode_and_prep(seq, bias, mmat, gmat, ep, dw):
        x = ep['word_emb'][seq] + ep['pos_emb'][:S][None, :, :]
        x = x.reshape(B * S, H).astype(F32)
        enc, prob, nums = pl.pallas_call(
            enc_kernel,
            out_shape=(jax.ShapeDtypeStruct((B * S, H), F32),
                       jax.ShapeDtypeStruct((B, H), F32),
                       jax.ShapeDtypeStruct((B * Ncopy, H), F32)),
            scratch_shapes=[pltpu.VMEM((B * S, H), F32)],
        )(x, bias, mmat, gmat, ep['eg'], ep['eb'],
          ep['wqkv'], ep['bqkv'], ep['wo'], ep['bo'], ep['ln1g'], ep['ln1b'],
          ep['w1'], ep['b1'], ep['w2'], ep['b2'], ep['ln2g'], ep['ln2b'])
        # hoisted: current_nums_embeddings ([generate embs | gathered nums])
        emb_flat = jnp.concatenate(
            [jnp.broadcast_to(dw['genemb'][None], (B, Gs, H)),
             nums.reshape(B, Ncopy, H)], axis=1).reshape(B * O, H)
        emb_proj, enc_kp = pl.pallas_call(
            _prep_kernel,
            out_shape=(jax.ShapeDtypeStruct((B * O, H), F32),
                       jax.ShapeDtypeStruct((B * S, H), F32)),
        )(enc, emb_flat, dw['awk'], dw['swn'])
        return enc, prob, emb_flat, emb_proj, enc_kp

    @jax.jit
    def decoder_step(cur_rows, left_rows, has_left, gen_onehot,
                     enc, enc_kp, emb_proj, padm, numm, dw):
        cur = jnp.concatenate(cur_rows, axis=0)
        left = jnp.concatenate(left_rows, axis=0)
        out, numsc = pl.pallas_call(
            step_kernel,
            out_shape=(jax.ShapeDtypeStruct((B, OUT_W), F32),
                       jax.ShapeDtypeStruct((B * O, 1), F32)),
            scratch_shapes=[pltpu.VMEM((B, H), F32)],
        )(cur, left, has_left, gen_onehot, enc, enc_kp, emb_proj, padm, numm,
          dw['wl'], dw['bl'], dw['wr'], dw['br'],
          dw['awq'], dw['ab'], dw['av'], dw['avb'],
          dw['swl'], dw['sb'], dw['sv'], dw['svb'],
          dw['opsw'], dw['opsb'], dw['opemb'], dw['wgen'], dw['bgen'])
        op_score = out[:, 2 * H + E:2 * H + E + op_nums]
        num_score = numsc.reshape(B, O)
        logits = jnp.concatenate([op_score, num_score], axis=1)
        lrows = tuple(out[i:i + 1, 0:H] for i in range(B))
        rrows = tuple(out[i:i + 1, H:2 * H] for i in range(B))
        labrows = tuple(out[i:i + 1, 2 * H:2 * H + E] for i in range(B))
        return logits, lrows, rrows, labrows

    @jax.jit
    def merge_step(op_emb, s1, s2, w, b):
        return pl.pallas_call(
            merge_kernel, out_shape=jax.ShapeDtypeStruct((1, H), F32)
        )(op_emb, s1, s2, w, b)

    # ---- encoder + loop-invariant decoder projections (2 pallas_calls total) ----
    enc, prob, emb_flat, emb_proj, enc_kp = encode_and_prep(
        jnp.asarray(seq_np, jnp.int32), jnp.asarray(bias_np),
        jnp.asarray(M_np), jnp.asarray(G_np), eprep, dprep)

    padm = jnp.asarray(padm_np)
    numm = jnp.asarray(numm_np)
    num_emb_rows = [emb_flat[r:r + 1, :] for r in range(B * O)]   # one-time slices

    # ---- tree decoder, teacher forcing ----
    zero_row = jnp.zeros((1, H), F32)
    node_stacks = [[TreeNode(prob[b:b + 1, :])] for b in range(B)]
    embeddings_stacks = [[] for _ in range(B)]
    left_childs = [None] * B
    token_logits = []

    target_np = np.array(target, dtype=np.int64).T.copy()          # [T,B]
    T = target_np.shape[0]
    for t in range(T):
        cur_rows = tuple(zero_row if len(st) == 0 else st[-1].embedding
                         for st in node_stacks)
        left_rows = tuple(zero_row if lc is None else lc for lc in left_childs)
        has_left = np.asarray([[0.0] if lc is None else [1.0]
                               for lc in left_childs], np.float32)
        raw = target_np[t]
        gen_onehot = np.zeros((B, op_nums), np.float32)
        for b in range(B):
            tok = int(raw[b])
            gen_onehot[b, tok if 0 <= tok < num_start else 0] = 1.0

        logits, lrows, rrows, labrows = decoder_step(
            cur_rows, left_rows, has_left, gen_onehot,
            enc, enc_kp, emb_proj, padm, numm, dprep)
        token_logits.append(logits)

        # UNK resolution (needs this step's logits on host) — only if UNK present.
        if any(int(tok) == unk for tok in raw):
            tl = np.asarray(jax.device_get(logits))
            for i in range(B):
                if int(raw[i]) == unk:
                    stack_i = nums_stack[i].pop()
                    best, best_s = stack_i[0], -float('1e12')
                    for num in stack_i:
                        if tl[i, num_start + num] > best_s:
                            best, best_s = num, tl[i, num_start + num]
                    target_np[t, i] = best + num_start

        for idx in range(B):
            st = node_stacks[idx]
            o = embeddings_stacks[idx]
            i_tok = int(target_np[t, idx])
            if len(st) != 0:
                st.pop()
            else:
                left_childs[idx] = None
                continue
            if i_tok < num_start:
                st.append(TreeNode(rrows[idx]))
                st.append(TreeNode(lrows[idx], left_flag=True))
                o.append(TreeEmbedding(labrows[idx], False))
            else:
                current_num = num_emb_rows[idx * O + (i_tok - num_start)]
                while len(o) > 0 and o[-1].terminal:
                    sub = o.pop()
                    op = o.pop()
                    current_num = merge_step(op.embedding, sub.embedding,
                                             current_num,
                                             dprep['mergew'], dprep['mergeb'])
                o.append(TreeEmbedding(current_num, True))
            left_childs[idx] = (o[-1].embedding
                                if (len(o) > 0 and o[-1].terminal) else None)

    token_logits = jnp.stack(token_logits, axis=1)                  # [B,T,out_size]
    symbol_outputs = jnp.argmax(token_logits, axis=-1)              # [B,T]
    return token_logits, symbol_outputs, {}


# ----------------------------- parameter init ------------------------------

def init_params(key, cfg):
    H = cfg['hidden_size']
    E = cfg['embedding_size']
    V = cfg['vocab_size']
    F = cfg['ffn_size']
    op_nums = cfg['operator_nums']
    Gs = cfg['generate_size']
    max_pos = cfg['max_positions']
    ks = iter(jax.random.split(key, 256))

    def rnd(shape, scale=0.05):
        return (scale * jax.random.normal(next(ks), shape)).astype(F32)

    zeros = lambda s: jnp.zeros(s, F32)
    ones = lambda s: jnp.ones(s, F32)

    encoder = {
        'word_emb': rnd((V, H)), 'pos_emb': rnd((max_pos, H)),
        'emb_ln_g': ones((H,)), 'emb_ln_b': zeros((H,)), 'layers': [],
    }
    for _ in range(cfg['num_layers']):
        encoder['layers'].append({
            'wqkv': rnd((H, 3 * H)), 'bqkv': zeros((3 * H,)),
            'wo': rnd((H, H)), 'bo': zeros((H,)),
            'ln1_g': ones((H,)), 'ln1_b': zeros((H,)),
            'w1': rnd((H, F)), 'b1': zeros((F,)),
            'w2': rnd((F, H)), 'b2': zeros((H,)),
            'ln2_g': ones((H,)), 'ln2_b': zeros((H,)),
        })

    decoder = {
        'embedding_weight': rnd((1, Gs, H), 1.0),
        'concat_l_w': rnd((H, H)), 'concat_l_b': zeros((H,)),
        'concat_lg_w': rnd((H, H)), 'concat_lg_b': zeros((H,)),
        'concat_r_w': rnd((2 * H, H)), 'concat_r_b': zeros((H,)),
        'concat_rg_w': rnd((2 * H, H)), 'concat_rg_b': zeros((H,)),
        'ops_w': rnd((2 * H, op_nums)), 'ops_b': zeros((op_nums,)),
        'attn_wq': rnd((H, H)), 'attn_wk': rnd((H, H)), 'attn_b': zeros((H,)),
        'attn_v': rnd((H,)), 'attn_vb': zeros((1,)),
        'score_wl': rnd((2 * H, H)), 'score_wn': rnd((H, H)),
        'score_b': zeros((H,)), 'score_v': rnd((H,)), 'score_vb': zeros((1,)),
        'op_emb': rnd((op_nums, E), 1.0),
        'gen_l_w': rnd((2 * H + E, H)), 'gen_l_b': zeros((H,)),
        'gen_lg_w': rnd((2 * H + E, H)), 'gen_lg_b': zeros((H,)),
        'gen_r_w': rnd((2 * H + E, H)), 'gen_r_b': zeros((H,)),
        'gen_rg_w': rnd((2 * H + E, H)), 'gen_rg_b': zeros((H,)),
        'merge_w': rnd((2 * H + E, H)), 'merge_b': zeros((H,)),
        'merge_g_w': rnd((2 * H + E, H)), 'merge_g_b': zeros((H,)),
    }
    return {'encoder': encoder, 'decoder': decoder}


# ----------------------------- main -----------------------------------------

if __name__ == "__main__":
    cfg = {
        'hidden_size': 32,
        'embedding_size': 16,
        'vocab_size': 40,
        'ffn_size': 64,
        'num_layers': 2,
        'num_heads': 2,
        'max_positions': 16,
        'operator_nums': 5,
        'generate_size': 2,
        'in_pad_token': 0,
    }
    cfg['num_start'] = cfg['operator_nums']
    cfg['unk_token'] = -1   # no UNK symbol present in this synthetic setup

    key = jax.random.PRNGKey(0)
    pkey, dkey = jax.random.split(key)
    params = init_params(pkey, cfg)

    B, S = 2, 8
    # np.array(...) makes a writable host copy (device_get arrays are read-only)
    seq_np = np.array(jax.device_get(
        jax.random.randint(dkey, (B, S), 1, cfg['vocab_size'])), dtype=np.int32)
    seq_length = [8, 6]
    for b in range(B):
        seq_np[b, seq_length[b]:] = cfg['in_pad_token']

    num_pos = [[1, 3], [2, 4, 5]]
    num_size = [len(p) for p in num_pos]
    nums_stack = [[] for _ in range(B)]
    ns = cfg['num_start']
    # prefix-equation style targets: operator tokens < num_start, numbers >= num_start
    target = [
        [0, ns + 0, ns + 1, 1, ns + 2],
        [2, ns + 0, ns + 3, 0, ns + 1],
    ]

    token_logits, symbol_outputs, _ = mwp_deberta_forward(
        params, cfg, seq_np, seq_length, nums_stack, num_size, num_pos, target)
    jax.block_until_ready(token_logits)
    jax.block_until_ready(symbol_outputs)

    out_size = cfg['operator_nums'] + cfg['generate_size'] + max(num_size)
    assert token_logits.shape == (B, len(target[0]), out_size)
    assert symbol_outputs.shape == (B, len(target[0]))
    print("KERNEL_OK")
</pallas_src>

<mosaic_0001>
module attributes {stable_mosaic.version = 11 : i64} {
  func.func @_prep_kernel(%arg0: memref<16x32xf32, #tpu.memory_space<vmem>>, %arg1: memref<10x32xf32, #tpu.memory_space<vmem>>, %arg2: memref<32x32xbf16, #tpu.memory_space<vmem>>, %arg3: memref<32x32xbf16, #tpu.memory_space<vmem>>, %arg4: memref<10x32xf32, #tpu.memory_space<vmem>>, %arg5: memref<16x32xf32, #tpu.memory_space<vmem>>) attributes {dimension_semantics = [], scalar_prefetch = 0 : i64, scratch_operands = 0 : i64, tpu.core_type = #tpu.core_type<tc>} {
    %c0 = arith.constant 0 : index
    %c0_0 = arith.constant 0 : index
    %0 = vector.load %arg1[%c0, %c0_0] : memref<10x32xf32, #tpu.memory_space<vmem>>, vector<10x32xf32>
    %1 = arith.truncf %0 : vector<10x32xf32> to vector<10x32xbf16>
    %c0_1 = arith.constant 0 : index
    %c0_2 = arith.constant 0 : index
    %2 = vector.load %arg3[%c0_1, %c0_2] : memref<32x32xbf16, #tpu.memory_space<vmem>>, vector<32x32xbf16>
    %cst = arith.constant dense<0.000000e+00> : vector<10x32xf32>
    %3 = tpu.matmul %1, %2, %cst {dimension_numbers = #tpu.dot_dimension_numbers<[1], [0], [0], [1], [0, 0, 1, 1], [], []>} : vector<10x32xbf16>, vector<32x32xbf16>, vector<10x32xf32> -> vector<10x32xf32>
    %c0_3 = arith.constant 0 : index
    %c0_4 = arith.constant 0 : index
    %4 = vector.load %arg4[%c0_3, %c0_4] : memref<10x32xf32, #tpu.memory_space<vmem>>, vector<10x32xf32>
    tpu.vector_store %arg4[%c0_3, %c0_4], %3 {strides = array<i32>} : memref<10x32xf32, #tpu.memory_space<vmem>>, vector<10x32xf32>,
    %c0_5 = arith.constant 0 : index
    %c0_6 = arith.constant 0 : index
    %5 = vector.load %arg0[%c0_5, %c0_6] : memref<16x32xf32, #tpu.memory_space<vmem>>, vector<16x32xf32>
    %6 = arith.truncf %5 : vector<16x32xf32> to vector<16x32xbf16>
    %c0_7 = arith.constant 0 : index
    %c0_8 = arith.constant 0 : index
    %7 = vector.load %arg2[%c0_7, %c0_8] : memref<32x32xbf16, #tpu.memory_space<vmem>>, vector<32x32xbf16>
    %cst_9 = arith.constant dense<0.000000e+00> : vector<16x32xf32>
    %8 = tpu.matmul %6, %7, %cst_9 {dimension_numbers = #tpu.dot_dimension_numbers<[1], [0], [0], [1], [0, 0, 1, 1], [], []>} : vector<16x32xbf16>, vector<32x32xbf16>, vector<16x32xf32> -> vector<16x32xf32>
    %c0_10 = arith.constant 0 : index
    %c0_11 = arith.constant 0 : index
    %9 = vector.load %arg5[%c0_10, %c0_11] : memref<16x32xf32, #tpu.memory_space<vmem>>, vector<16x32xf32>
    tpu.vector_store %arg5[%c0_10, %c0_11], %8 {strides = array<i32>} : memref<16x32xf32, #tpu.memory_space<vmem>>, vector<16x32xf32>,
    return
  }
}

module attributes {stable_mosaic.version = 11 : i64} {
  func.func @kernel(%arg0: memref<16x32xf32, #tpu.memory_space<vmem>>, %arg1: memref<2x8xf32, #tpu.memory_space<vmem>>, %arg2: memref<2x16xf32, #tpu.memory_space<vmem>>, %arg3: memref<6x16xf32, #tpu.memory_space<vmem>>, %arg4: memref<1x32xf32, #tpu.memory_space<vmem>>, %arg5: memref<1x32xf32, #tpu.memory_space<vmem>>, %arg6: memref<2x32x96xbf16, #tpu.memory_space<vmem>>, %arg7: memref<2x1x96xf32, #tpu.memory_space<vmem>>, %arg8: memref<2x32x32xbf16, #tpu.memory_space<vmem>>, %arg9: memref<2x1x32xf32, #tpu.memory_space<vmem>>, %arg10: memref<2x1x32xf32, #tpu.memory_space<vmem>>, %arg11: memref<2x1x32xf32, #tpu.memory_space<vmem>>, %arg12: memref<2x32x64xbf16, #tpu.memory_space<vmem>>, %arg13: memref<2x1x64xf32, #tpu.memory_space<vmem>>, %arg14: memref<2x64x32xbf16, #tpu.memory_space<vmem>>, %arg15: memref<2x1x32xf32, #tpu.memory_space<vmem>>, %arg16: memref<2x1x32xf32, #tpu.memory_space<vmem>>, %arg17: memref<2x1x32xf32, #tpu.memory_space<vmem>>, %arg18: memref<16x32xf32, #tpu.memory_space<vmem>>, %arg19: memref<2x32xf32, #tpu.memory_space<vmem>>, %arg20: memref<6x32xf32, #tpu.memory_space<vmem>>, %arg21: memref<16x32xf32, #tpu.memory_space<vmem>>) attributes {dimension_semantics = [], scalar_prefetch = 0 : i64, scratch_operands = 1 : i64, tpu.core_type = #tpu.core_type<tc>} {
    %c0 = arith.constant 0 : index
    %c0_0 = arith.constant 0 : index
    %0 = vector.load %arg0[%c0, %c0_0] : memref<16x32xf32, #tpu.memory_space<vmem>>, vector<16x32xf32>
    %c0_1 = arith.constant 0 : index
    %c0_2 = arith.constant 0 : index
    %1 = vector.load %arg4[%c0_1, %c0_2] : memref<1x32xf32, #tpu.memory_space<vmem>>, vector<1x32xf32>
    %c0_3 = arith.constant 0 : index
    %c0_4 = arith.constant 0 : index
    %2 = vector.load %arg5[%c0_3, %c0_4] : memref<1x32xf32, #tpu.memory_space<vmem>>, vector<1x32xf32>
    %cst = arith.constant dense<0.000000e+00> : vector<16xf32>
    %3 = vector.multi_reduction <add>, %0, %cst [1] : vector<16x32xf32> to vector<16xf32>
    %4 = vector.shape_cast %3 : vector<16xf32> to vector<16x1xf32>
    %cst_5 = arith.constant 3.200000e+01 : f32
    %5 = vector.broadcast %cst_5 : f32 to vector<16x1xf32>
    %6 = arith.divf %4, %5 : vector<16x1xf32>
    %7 = vector.broadcast %6 : vector<16x1xf32> to vector<16x32xf32>
    %8 = arith.subf %0, %7 : vector<16x32xf32>
    %9 = arith.mulf %8, %8 : vector<16x32xf32>
    %cst_6 = arith.constant dense<0.000000e+00> : vector<16xf32>
    %10 = vector.multi_reduction <add>, %9, %cst_6 [1] : vector<16x32xf32> to vector<16xf32>
    %11 = vector.shape_cast %10 : vector<16xf32> to vector<16x1xf32>
    %cst_7 = arith.constant 3.200000e+01 : f32
    %12 = vector.broadcast %cst_7 : f32 to vector<16x1xf32>
    %13 = arith.divf %11, %12 : vector<16x1xf32>
    %14 = vector.broadcast %6 : vector<16x1xf32> to vector<16x32xf32>
    %15 = arith.subf %0, %14 : vector<16x32xf32>
    %cst_8 = arith.constant 1.000000e-07 : f32
    %16 = vector.broadcast %cst_8 : f32 to vector<16x1xf32>
    %17 = arith.addf %13, %16 : vector<16x1xf32>
    %18 = math.rsqrt %17 : vector<16x1xf32>
    %19 = vector.broadcast %18 : vector<16x1xf32> to vector<16x32xf32>
    %20 = arith.mulf %15, %19 : vector<16x32xf32>
    %21 = vector.broadcast %1 : vector<1x32xf32> to vector<16x32xf32>
    %22 = arith.mulf %20, %21 : vector<16x32xf32>
    %23 = vector.broadcast %2 : vector<1x32xf32> to vector<16x32xf32>
    %24 = arith.addf %22, %23 : vector<16x32xf32>
    %25 = arith.truncf %24 : vector<16x32xf32> to vector<16x32xbf16>
    %c0_9 = arith.constant 0 : index
    %c0_10 = arith.constant 0 : index
    %c0_11 = arith.constant 0 : index
    %26 = vector.load %arg6[%c0_9, %c0_10, %c0_11] : memref<2x32x96xbf16, #tpu.memory_space<vmem>>, vector<1x32x96xbf16>
    %27 = vector.shape_cast %26 : vector<1x32x96xbf16> to vector<32x96xbf16>
    %cst_12 = arith.constant dense<0.000000e+00> : vector<16x96xf32>
    %28 = tpu.matmul %25, %27, %cst_12 {dimension_numbers = #tpu.dot_dimension_numbers<[1], [0], [0], [1], [0, 0, 1, 1], [], []>} : vector<16x32xbf16>, vector<32x96xbf16>, vector<16x96xf32> -> vector<16x96xf32>
    %c0_13 = arith.constant 0 : index
    %c0_14 = arith.constant 0 : index
    %c0_15 = arith.constant 0 : index
    %29 = vector.load %arg7[%c0_13, %c0_14, %c0_15] : memref<2x1x96xf32, #tpu.memory_space<vmem>>, vector<1x1x96xf32>
    %30 = vector.shape_cast %29 : vector<1x1x96xf32> to vector<1x96xf32>
    %31 = vector.broadcast %30 : vector<1x96xf32> to vector<16x96xf32>
    %32 = arith.addf %28, %31 : vector<16x96xf32>
    %c0_16 = arith.constant 0 : index
    %c0_17 = arith.constant 0 : index
    %33 = vector.load %arg1[%c0_16, %c0_17] : memref<2x8xf32, #tpu.memory_space<vmem>>, vector<1x8xf32>
    %34 = vector.extract_strided_slice %32 {offsets = [0, 0], sizes = [8, 16], strides = [1, 1]} : vector<16x96xf32> to vector<8x16xf32>
    %35 = vector.extract_strided_slice %32 {offsets = [0, 32], sizes = [8, 16], strides = [1, 1]} : vector<16x96xf32> to vector<8x16xf32>
    %36 = vector.extract_strided_slice %32 {offsets = [0, 64], sizes = [8, 16], strides = [1, 1]} : vector<16x96xf32> to vector<8x16xf32>
    %37 = arith.truncf %34 : vector<8x16xf32> to vector<8x16xbf16>
    %38 = arith.truncf %35 : vector<8x16xf32> to vector<8x16xbf16>
    "tpu.trace_start"() <{level = 10 : i32, message = "qd,kd->qk"}> : () -> ()
    %cst_18 = arith.constant dense<0.000000e+00> : vector<8x8xf32>
    %39 = tpu.matmul %37, %38, %cst_18 {dimension_numbers = #tpu.dot_dimension_numbers<[1], [1], [0], [0], [0, 0, 1, 0], [], []>} : vector<8x16xbf16>, vector<8x16xbf16>, vector<8x8xf32> -> vector<8x8xf32>
    "tpu.trace_stop"() : () -> ()
    %cst_19 = arith.constant 2.500000e-01 : f32
    %40 = vector.broadcast %cst_19 : f32 to vector<8x8xf32>
    %41 = arith.mulf %39, %40 : vector<8x8xf32>
    %42 = vector.broadcast %33 : vector<1x8xf32> to vector<8x8xf32>
    %43 = arith.addf %41, %42 : vector<8x8xf32>
    %cst_20 = arith.constant dense<0xFF800000> : vector<8xf32>
    %44 = vector.multi_reduction <maximumf>, %43, %cst_20 [1] : vector<8x8xf32> to vector<8xf32>
    %45 = vector.shape_cast %44 : vector<8xf32> to vector<8x1xf32>
    %46 = vector.broadcast %45 : vector<8x1xf32> to vector<8x8xf32>
    %47 = arith.subf %43, %46 : vector<8x8xf32>
    %48 = math.exp %47 : vector<8x8xf32>
    %cst_21 = arith.constant dense<0.000000e+00> : vector<8xf32>
    %49 = vector.multi_reduction <add>, %48, %cst_21 [1] : vector<8x8xf32> to vector<8xf32>
    %50 = vector.shape_cast %49 : vector<8xf32> to vector<8x1xf32>
    %51 = vector.broadcast %50 : vector<8x1xf32> to vector<8x8xf32>
    %52 = arith.divf %48, %51 : vector<8x8xf32>
    %53 = arith.truncf %52 : vector<8x8xf32> to vector<8x8xbf16>
    %54 = arith.truncf %36 : vector<8x16xf32> to vector<8x16xbf16>
    %cst_22 = arith.constant dense<0.000000e+00> : vector<8x16xf32>
    %55 = tpu.matmul %53, %54, %cst_22 {dimension_numbers = #tpu.dot_dimension_numbers<[1], [0], [0], [1], [0, 0, 1, 1], [], []>} : vector<8x8xbf16>, vector<8x16xbf16>, vector<8x16xf32> -> vector<8x16xf32>
    %c0_23 = arith.constant 0 : index
    %c0_24 = arith.constant 0 : index
    %56 = vector.load %arg21[%c0_23, %c0_24] : memref<16x32xf32, #tpu.memory_space<vmem>>, vector<8x16xf32>
    tpu.vector_store %arg21[%c0_23, %c0_24], %55 {strides = array<i32>} : memref<16x32xf32, #tpu.memory_space<vmem>>, vector<8x16xf32>,
    %57 = vector.extract_strided_slice %32 {offsets = [0, 16], sizes = [8, 16], strides = [1, 1]} : vector<16x96xf32> to vector<8x16xf32>
    %58 = vector.extract_strided_slice %32 {offsets = [0, 48], sizes = [8, 16], strides = [1, 1]} : vector<16x96xf32> to vector<8x16xf32>
    %59 = vector.extract_strided_slice %32 {offsets = [0, 80], sizes = [8, 16], strides = [1, 1]} : vector<16x96xf32> to vector<8x16xf32>
    %60 = arith.truncf %57 : vector<8x16xf32> to vector<8x16xbf16>
    %61 = arith.truncf %58 : vector<8x16xf32> to vector<8x16xbf16>
    "tpu.trace_start"() <{level = 10 : i32, message = "qd,kd->qk"}> : () -> ()
    %cst_25 = arith.constant dense<0.000000e+00> : vector<8x8xf32>
    %62 = tpu.matmul %60, %61, %cst_25 {dimension_numbers = #tpu.dot_dimension_numbers<[1], [1], [0], [0], [0, 0, 1, 0], [], []>} : vector<8x16xbf16>, vector<8x16xbf16>, vector<8x8xf32> -> vector<8x8xf32>
    "tpu.trace_stop"() : () -> ()
    %cst_26 = arith.constant 2.500000e-01 : f32
    %63 = vector.broadcast %cst_26 : f32 to vector<8x8xf32>
    %64 = arith.mulf %62, %63 : vector<8x8xf32>
    %65 = vector.broadcast %33 : vector<1x8xf32> to vector<8x8xf32>
    %66 = arith.addf %64, %65 : vector<8x8xf32>
    %cst_27 = arith.constant dense<0xFF800000> : vector<8xf32>
    %67 = vector.multi_reduction <maximumf>, %66, %cst_27 [1] : vector<8x8xf32> to vector<8xf32>
    %68 = vector.shape_cast %67 : vector<8xf32> to vector<8x1xf32>
    %69 = vector.broadcast %68 : vector<8x1xf32> to vector<8x8xf32>
    %70 = arith.subf %66, %69 : vector<8x8xf32>
    %71 = math.exp %70 : vector<8x8xf32>
    %cst_28 = arith.constant dense<0.000000e+00> : vector<8xf32>
    %72 = vector.multi_reduction <add>, %71, %cst_28 [1] : vector<8x8xf32> to vector<8xf32>
    %73 = vector.shape_cast %72 : vector<8xf32> to vector<8x1xf32>
    %74 = vector.broadcast %73 : vector<8x1xf32> to vector<8x8xf32>
    %75 = arith.divf %71, %74 : vector<8x8xf32>
    %76 = arith.truncf %75 : vector<8x8xf32> to vector<8x8xbf16>
    %77 = arith.truncf %59 : vector<8x16xf32> to vector<8x16xbf16>
    %cst_29 = arith.constant dense<0.000000e+00> : vector<8x16xf32>
    %78 = tpu.matmul %76, %77, %cst_29 {dimension_numbers = #tpu.dot_dimension_numbers<[1], [0], [0], [1], [0, 0, 1, 1], [], []>} : vector<8x8xbf16>, vector<8x16xbf16>, vector<8x16xf32> -> vector<8x16xf32>
    %c0_30 = arith.constant 0 : index
    %c16 = arith.constant 16 : index
    %79 = vector.load %arg21[%c0_30, %c16] : memref<16x32xf32, #tpu.memory_space<vmem>>, vector<8x16xf32>
    tpu.vector_store %arg21[%c0_30, %c16], %78 {strides = array<i32>} : memref<16x32xf32, #tpu.memory_space<vmem>>, vector<8x16xf32>,
    %c1 = arith.constant 1 : index
    %c0_31 = arith.constant 0 : index
    %80 = vector.load %arg1[%c1, %c0_31] : memref<2x8xf32, #tpu.memory_space<vmem>>, vector<1x8xf32>
    %81 = vector.extract_strided_slice %32 {offsets = [8, 0], sizes = [8, 16], strides = [1, 1]} : vector<16x96xf32> to vector<8x16xf32>
    %82 = vector.extract_strided_slice %32 {offsets = [8, 32], sizes = [8, 16], strides = [1, 1]} : vector<16x96xf32> to vector<8x16xf32>
    %83 = vector.extract_strided_slice %32 {offsets = [8, 64], sizes = [8, 16], strides = [1, 1]} : vector<16x96xf32> to vector<8x16xf32>
    %84 = arith.truncf %81 : vector<8x16xf32> to vector<8x16xbf16>
    %85 = arith.truncf %82 : vector<8x16xf32> to vector<8x16xbf16>
    "tpu.trace_start"() <{level = 10 : i32, message = "qd,kd->qk"}> : () -> ()
    %cst_32 = arith.constant dense<0.000000e+00> : vector<8x8xf32>
    %86 = tpu.matmul %84, %85, %cst_32 {dimension_numbers = #tpu.dot_dimension_numbers<[1], [1], [0], [0], [0, 0, 1, 0], [], []>} : vector<8x16xbf16>, vector<8x16xbf16>, vector<8x8xf32> -> vector<8x8xf32>
    "tpu.trace_stop"() : () -> ()
    %cst_33 = arith.constant 2.500000e-01 : f32
    %87 = vector.broadcast %cst_33 : f32 to vector<8x8xf32>
    %88 = arith.mulf %86, %87 : vector<8x8xf32>
    %89 = vector.broadcast %80 : vector<1x8xf32> to vector<8x8xf32>
    %90 = arith.addf %88, %89 : vector<8x8xf32>
    %cst_34 = arith.constant dense<0xFF800000> : vector<8xf32>
    %91 = vector.multi_reduction <maximumf>, %90, %cst_34 [1] : vector<8x8xf32> to vector<8xf32>
    %92 = vector.shape_cast %91 : vector<8xf32> to vector<8x1xf32>
    %93 = vector.broadcast %92 : vector<8x1xf32> to vector<8x8xf32>
    %94 = arith.subf %90, %93 : vector<8x8xf32>
    %95 = math.exp %94 : vector<8x8xf32>
    %cst_35 = arith.constant dense<0.000000e+00> : vector<8xf32>
    %96 = vector.multi_reduction <add>, %95, %cst_35 [1] : vector<8x8xf32> to vector<8xf32>
    %97 = vector.shape_cast %96 : vector<8xf32> to vector<8x1xf32>
    %98 = vector.broadcast %97 : vector<8x1xf32> to vector<8x8xf32>
    %99 = arith.divf %95, %98 : vector<8x8xf32>
    %100 = arith.truncf %99 : vector<8x8xf32> to vector<8x8xbf16>
    %101 = arith.truncf %83 : vector<8x16xf32> to vector<8x16xbf16>
    %cst_36 = arith.constant dense<0.000000e+00> : vector<8x16xf32>
    %102 = tpu.matmul %100, %101, %cst_36 {dimension_numbers = #tpu.dot_dimension_numbers<[1], [0], [0], [1], [0, 0, 1, 1], [], []>} : vector<8x8xbf16>, vector<8x16xbf16>, vector<8x16xf32> -> vector<8x16xf32>
    %c8 = arith.constant 8 : index
    %c0_37 = arith.constant 0 : index
    %103 = vector.load %arg21[%c8, %c0_37] : memref<16x32xf32, #tpu.memory_space<vmem>>, vector<8x16xf32>
    tpu.vector_store %arg21[%c8, %c0_37], %102 {strides = array<i32>} : memref<16x32xf32, #tpu.memory_space<vmem>>, vector<8x16xf32>,
    %104 = vector.extract_strided_slice %32 {offsets = [8, 16], sizes = [8, 16], strides = [1, 1]} : vector<16x96xf32> to vector<8x16xf32>
    %105 = vector.extract_strided_slice %32 {offsets = [8, 48], sizes = [8, 16], strides = [1, 1]} : vector<16x96xf32> to vector<8x16xf32>
    %106 = vector.extract_strided_slice %32 {offsets = [8, 80], sizes = [8, 16], strides = [1, 1]} : vector<16x96xf32> to vector<8x16xf32>
    %107 = arith.truncf %104 : vector<8x16xf32> to vector<8x16xbf16>
    %108 = arith.truncf %105 : vector<8x16xf32> to vector<8x16xbf16>
    "tpu.trace_start"() <{level = 10 : i32, message = "qd,kd->qk"}> : () -> ()
    %cst_38 = arith.constant dense<0.000000e+00> : vector<8x8xf32>
    %109 = tpu.matmul %107, %108, %cst_38 {dimension_numbers = #tpu.dot_dimension_numbers<[1], [1], [0], [0], [0, 0, 1, 0], [], []>} : vector<8x16xbf16>, vector<8x16xbf16>, vector<8x8xf32> -> vector<8x8xf32>
    "tpu.trace_stop"() : () -> ()
    %cst_39 = arith.constant 2.500000e-01 : f32
    %110 = vector.broadcast %cst_39 : f32 to vector<8x8xf32>
    %111 = arith.mulf %109, %110 : vector<8x8xf32>
    %112 = vector.broadcast %80 : vector<1x8xf32> to vector<8x8xf32>
    %113 = arith.addf %111, %112 : vector<8x8xf32>
    %cst_40 = arith.constant dense<0xFF800000> : vector<8xf32>
    %114 = vector.multi_reduction <maximumf>, %113, %cst_40 [1] : vector<8x8xf32> to vector<8xf32>
    %115 = vector.shape_cast %114 : vector<8xf32> to vector<8x1xf32>
    %116 = vector.broadcast %115 : vector<8x1xf32> to vector<8x8xf32>
    %117 = arith.subf %113, %116 : vector<8x8xf32>
    %118 = math.exp %117 : vector<8x8xf32>
    %cst_41 = arith.constant dense<0.000000e+00> : vector<8xf32>
    %119 = vector.multi_reduction <add>, %118, %cst_41 [1] : vector<8x8xf32> to vector<8xf32>
    %120 = vector.shape_cast %119 : vector<8xf32> to vector<8x1xf32>
    %121 = vector.broadcast %120 : vector<8x1xf32> to vector<8x8xf32>
    %122 = arith.divf %118, %121 : vector<8x8xf32>
    %123 = arith.truncf %122 : vector<8x8xf32> to vector<8x8xbf16>
    %124 = arith.truncf %106 : vector<8x16xf32> to vector<8x16xbf16>
    %cst_42 = arith.constant dense<0.000000e+00> : vector<8x16xf32>
    %125 = tpu.matmul %123, %124, %cst_42 {dimension_numbers = #tpu.dot_dimension_numbers<[1], [0], [0], [1], [0, 0, 1, 1], [], []>} : vector<8x8xbf16>, vector<8x16xbf16>, vector<8x16xf32> -> vector<8x16xf32>
    %c8_43 = arith.constant 8 : index
    %c16_44 = arith.constant 16 : index
    %126 = vector.load %arg21[%c8_43, %c16_44] : memref<16x32xf32, #tpu.memory_space<vmem>>, vector<8x16xf32>
    tpu.vector_store %arg21[%c8_43, %c16_44], %125 {strides = array<i32>} : memref<16x32xf32, #tpu.memory_space<vmem>>, vector<8x16xf32>,
    %c0_45 = arith.constant 0 : index
    %c0_46 = arith.constant 0 : index
    %127 = vector.load %arg21[%c0_45, %c0_46] : memref<16x32xf32, #tpu.memory_space<vmem>>, vector<16x32xf32>
    %128 = arith.truncf %127 : vector<16x32xf32> to vector<16x32xbf16>
    %c0_47 = arith.constant 0 : index
    %c0_48 = arith.constant 0 : index
    %c0_49 = arith.constant 0 : index
    %129 = vector.load %arg8[%c0_47, %c0_48, %c0_49] : memref<2x32x32xbf16, #tpu.memory_space<vmem>>, vector<1x32x32xbf16>
    %130 = vector.shape_cast %129 : vector<1x32x32xbf16> to vector<32x32xbf16>
    %cst_50 = arith.constant dense<0.000000e+00> : vector<16x32xf32>
    %131 = tpu.matmul %128, %130, %cst_50 {dimension_numbers = #tpu.dot_dimension_numbers<[1], [0], [0], [1], [0, 0, 1, 1], [], []>} : vector<16x32xbf16>, vector<32x32xbf16>, vector<16x32xf32> -> vector<16x32xf32>
    %c0_51 = arith.constant 0 : index
    %c0_52 = arith.constant 0 : index
    %c0_53 = arith.constant 0 : index
    %132 = vector.load %arg9[%c0_51, %c0_52, %c0_53] : memref<2x1x32xf32, #tpu.memory_space<vmem>>, vector<1x1x32xf32>
    %133 = vector.shape_cast %132 : vector<1x1x32xf32> to vector<1x32xf32>
    %134 = vector.broadcast %133 : vector<1x32xf32> to vector<16x32xf32>
    %135 = arith.addf %131, %134 : vector<16x32xf32>
    %136 = arith.addf %24, %135 : vector<16x32xf32>
    %c0_54 = arith.constant 0 : index
    %c0_55 = arith.constant 0 : index
    %c0_56 = arith.constant 0 : index
    %137 = vector.load %arg10[%c0_54, %c0_55, %c0_56] : memref<2x1x32xf32, #tpu.memory_space<vmem>>, vector<1x1x32xf32>
    %138 = vector.shape_cast %137 : vector<1x1x32xf32> to vector<1x32xf32>
    %c0_57 = arith.constant 0 : index
    %c0_58 = arith.constant 0 : index
    %c0_59 = arith.constant 0 : index
    %139 = vector.load %arg11[%c0_57, %c0_58, %c0_59] : memref<2x1x32xf32, #tpu.memory_space<vmem>>, vector<1x1x32xf32>
    %140 = vector.shape_cast %139 : vector<1x1x32xf32> to vector<1x32xf32>
    %cst_60 = arith.constant dense<0.000000e+00> : vector<16xf32>
    %141 = vector.multi_reduction <add>, %136, %cst_60 [1] : vector<16x32xf32> to vector<16xf32>
    %142 = vector.shape_cast %141 : vector<16xf32> to vector<16x1xf32>
    %cst_61 = arith.constant 3.200000e+01 : f32
    %143 = vector.broadcast %cst_61 : f32 to vector<16x1xf32>
    %144 = arith.divf %142, %143 : vector<16x1xf32>
    %145 = vector.broadcast %144 : vector<16x1xf32> to vector<16x32xf32>
    %146 = arith.subf %136, %145 : vector<16x32xf32>
    %147 = arith.mulf %146, %146 : vector<16x32xf32>
    %cst_62 = arith.constant dense<0.000000e+00> : vector<16xf32>
    %148 = vector.multi_reduction <add>, %147, %cst_62 [1] : vector<16x32xf32> to vector<16xf32>
    %149 = vector.shape_cast %148 : vector<16xf32> to vector<16x1xf32>
    %cst_63 = arith.constant 3.200000e+01 : f32
    %150 = vector.broadcast %cst_63 : f32 to vector<16x1xf32>
    %151 = arith.divf %149, %150 : vector<16x1xf32>
    %152 = vector.broadcast %144 : vector<16x1xf32> to vector<16x32xf32>
    %153 = arith.subf %136, %152 : vector<16x32xf32>
    %cst_64 = arith.constant 1.000000e-07 : f32
    %154 = vector.broadcast %cst_64 : f32 to vector<16x1xf32>
    %155 = arith.addf %151, %154 : vector<16x1xf32>
    %156 = math.rsqrt %155 : vector<16x1xf32>
    %157 = vector.broadcast %156 : vector<16x1xf32> to vector<16x32xf32>
    %158 = arith.mulf %153, %157 : vector<16x32xf32>
    %159 = vector.broadcast %138 : vector<1x32xf32> to vector<16x32xf32>
    %160 = arith.mulf %158, %159 : vector<16x32xf32>
    %161 = vector.broadcast %140 : vector<1x32xf32> to vector<16x32xf32>
    %162 = arith.addf %160, %161 : vector<16x32xf32>
    %163 = arith.truncf %162 : vector<16x32xf32> to vector<16x32xbf16>
    %c0_65 = arith.constant 0 : index
    %c0_66 = arith.constant 0 : index
    %c0_67 = arith.constant 0 : index
    %164 = vector.load %arg12[%c0_65, %c0_66, %c0_67] : memref<2x32x64xbf16, #tpu.memory_space<vmem>>, vector<1x32x64xbf16>
    %165 = vector.shape_cast %164 : vector<1x32x64xbf16> to vector<32x64xbf16>
    %cst_68 = arith.constant dense<0.000000e+00> : vector<16x64xf32>
    %166 = tpu.matmul %163, %165, %cst_68 {dimension_numbers = #tpu.dot_dimension_numbers<[1], [0], [0], [1], [0, 0, 1, 1], [], []>} : vector<16x32xbf16>, vector<32x64xbf16>, vector<16x64xf32> -> vector<16x64xf32>
    %c0_69 = arith.constant 0 : index
    %c0_70 = arith.constant 0 : index
    %c0_71 = arith.constant 0 : index
    %167 = vector.load %arg13[%c0_69, %c0_70, %c0_71] : memref<2x1x64xf32, #tpu.memory_space<vmem>>, vector<1x1x64xf32>
    %168 = vector.shape_cast %167 : vector<1x1x64xf32> to vector<1x64xf32>
    %169 = vector.broadcast %168 : vector<1x64xf32> to vector<16x64xf32>
    %170 = arith.addf %166, %169 : vector<16x64xf32>
    %171 = arith.mulf %170, %170 : vector<16x64xf32>
    %172 = arith.mulf %170, %171 : vector<16x64xf32>
    %cst_72 = arith.constant 4.471500e-02 : f32
    %173 = vector.broadcast %cst_72 : f32 to vector<16x64xf32>
    %174 = arith.mulf %173, %172 : vector<16x64xf32>
    %175 = arith.addf %170, %174 : vector<16x64xf32>
    %cst_73 = arith.constant 0.797884583 : f32
    %176 = vector.broadcast %cst_73 : f32 to vector<16x64xf32>
    %177 = arith.mulf %176, %175 : vector<16x64xf32>
    %178 = math.tanh %177 : vector<16x64xf32>
    %cst_74 = arith.constant 1.000000e+00 : f32
    %179 = vector.broadcast %cst_74 : f32 to vector<16x64xf32>
    %180 = arith.addf %179, %178 : vector<16x64xf32>
    %cst_75 = arith.constant 5.000000e-01 : f32
    %181 = vector.broadcast %cst_75 : f32 to vector<16x64xf32>
    %182 = arith.mulf %181, %180 : vector<16x64xf32>
    %183 = arith.mulf %170, %182 : vector<16x64xf32>
    %184 = arith.truncf %183 : vector<16x64xf32> to vector<16x64xbf16>
    %c0_76 = arith.constant 0 : index
    %c0_77 = arith.constant 0 : index
    %c0_78 = arith.constant 0 : index
    %185 = vector.load %arg14[%c0_76, %c0_77, %c0_78] : memref<2x64x32xbf16, #tpu.memory_space<vmem>>, vector<1x64x32xbf16>
    %186 = vector.shape_cast %185 : vector<1x64x32xbf16> to vector<64x32xbf16>
    %cst_79 = arith.constant dense<0.000000e+00> : vector<16x32xf32>
    %187 = tpu.matmul %184, %186, %cst_79 {dimension_numbers = #tpu.dot_dimension_numbers<[1], [0], [0], [1], [0, 0, 1, 1], [], []>} : vector<16x64xbf16>, vector<64x32xbf16>, vector<16x32xf32> -> vector<16x32xf32>
    %c0_80 = arith.constant 0 : index
    %c0_81 = arith.constant 0 : index
    %c0_82 = arith.constant 0 : index
    %188 = vector.load %arg15[%c0_80, %c0_81, %c0_82] : memref<2x1x32xf32, #tpu.memory_space<vmem>>, vector<1x1x32xf32>
    %189 = vector.shape_cast %188 : vector<1x1x32xf32> to vector<1x32xf32>
    %190 = vector.broadcast %189 : vector<1x32xf32> to vector<16x32xf32>
    %191 = arith.addf %187, %190 : vector<16x32xf32>
    %192 = arith.addf %162, %191 : vector<16x32xf32>
    %c0_83 = arith.constant 0 : index
    %c0_84 = arith.constant 0 : index
    %c0_85 = arith.constant 0 : index
    %193 = vector.load %arg16[%c0_83, %c0_84, %c0_85] : memref<2x1x32xf32, #tpu.memory_space<vmem>>, vector<1x1x32xf32>
    %194 = vector.shape_cast %193 : vector<1x1x32xf32> to vector<1x32xf32>
    %c0_86 = arith.constant 0 : index
    %c0_87 = arith.constant 0 : index
    %c0_88 = arith.constant 0 : index
    %195 = vector.load %arg17[%c0_86, %c0_87, %c0_88] : memref<2x1x32xf32, #tpu.memory_space<vmem>>, vector<1x1x32xf32>
    %196 = vector.shape_cast %195 : vector<1x1x32xf32> to vector<1x32xf32>
    %cst_89 = arith.constant dense<0.000000e+00> : vector<16xf32>
    %197 = vector.multi_reduction <add>, %192, %cst_89 [1] : vector<16x32xf32> to vector<16xf32>
    %198 = vector.shape_cast %197 : vector<16xf32> to vector<16x1xf32>
    %cst_90 = arith.constant 3.200000e+01 : f32
    %199 = vector.broadcast %cst_90 : f32 to vector<16x1xf32>
    %200 = arith.divf %198, %199 : vector<16x1xf32>
    %201 = vector.broadcast %200 : vector<16x1xf32> to vector<16x32xf32>
    %202 = arith.subf %192, %201 : vector<16x32xf32>
    %203 = arith.mulf %202, %202 : vector<16x32xf32>
    %cst_91 = arith.constant dense<0.000000e+00> : vector<16xf32>
    %204 = vector.multi_reduction <add>, %203, %cst_91 [1] : vector<16x32xf32> to vector<16xf32>
    %205 = vector.shape_cast %204 : vector<16xf32> to vector<16x1xf32>
    %cst_92 = arith.constant 3.200000e+01 : f32
    %206 = vector.broadcast %cst_92 : f32 to vector<16x1xf32>
    %207 = arith.divf %205, %206 : vector<16x1xf32>
    %208 = vector.broadcast %200 : vector<16x1xf32> to vector<16x32xf32>
    %209 = arith.subf %192, %208 : vector<16x32xf32>
    %cst_93 = arith.constant 1.000000e-07 : f32
    %210 = vector.broadcast %cst_93 : f32 to vector<16x1xf32>
    %211 = arith.addf %207, %210 : vector<16x1xf32>
    %212 = math.rsqrt %211 : vector<16x1xf32>
    %213 = vector.broadcast %212 : vector<16x1xf32> to vector<16x32xf32>
    %214 = arith.mulf %209, %213 : vector<16x32xf32>
    %215 = vector.broadcast %194 : vector<1x32xf32> to vector<16x32xf32>
    %216 = arith.mulf %214, %215 : vector<16x32xf32>
    %217 = vector.broadcast %196 : vector<1x32xf32> to vector<16x32xf32>
    %218 = arith.addf %216, %217 : vector<16x32xf32>
    %219 = arith.truncf %218 : vector<16x32xf32> to vector<16x32xbf16>
    %c1_94 = arith.constant 1 : index
    %c0_95 = arith.constant 0 : index
    %c0_96 = arith.constant 0 : index
    %220 = vector.load %arg6[%c1_94, %c0_95, %c0_96] : memref<2x32x96xbf16, #tpu.memory_space<vmem>>, vector<1x32x96xbf16>
    %221 = vector.shape_cast %220 : vector<1x32x96xbf16> to vector<32x96xbf16>
    %cst_97 = arith.constant dense<0.000000e+00> : vector<16x96xf32>
    %222 = tpu.matmul %219, %221, %cst_97 {dimension_numbers = #tpu.dot_dimension_numbers<[1], [0], [0], [1], [0, 0, 1, 1], [], []>} : vector<16x32xbf16>, vector<32x96xbf16>, vector<16x96xf32> -> vector<16x96xf32>
    %c1_98 = arith.constant 1 : index
    %c0_99 = arith.constant 0 : index
    %c0_100 = arith.constant 0 : index
    %223 = vector.load %arg7[%c1_98, %c0_99, %c0_100] : memref<2x1x96xf32, #tpu.memory_space<vmem>>, vector<1x1x96xf32>
    %224 = vector.shape_cast %223 : vector<1x1x96xf32> to vector<1x96xf32>
    %225 = vector.broadcast %224 : vector<1x96xf32> to vector<16x96xf32>
    %226 = arith.addf %222, %225 : vector<16x96xf32>
    %c0_101 = arith.constant 0 : index
    %c0_102 = arith.constant 0 : index
    %227 = vector.load %arg1[%c0_101, %c0_102] : memref<2x8xf32, #tpu.memory_space<vmem>>, vector<1x8xf32>
    %228 = vector.extract_strided_slice %226 {offsets = [0, 0], sizes = [8, 16], strides = [1, 1]} : vector<16x96xf32> to vector<8x16xf32>
    %229 = vector.extract_strided_slice %226 {offsets = [0, 32], sizes = [8, 16], strides = [1, 1]} : vector<16x96xf32> to vector<8x16xf32>
    %230 = vector.extract_strided_slice %226 {offsets = [0, 64], sizes = [8, 16], strides = [1, 1]} : vector<16x96xf32> to vector<8x16xf32>
    %231 = arith.truncf %228 : vector<8x16xf32> to vector<8x16xbf16>
    %232 = arith.truncf %229 : vector<8x16xf32> to vector<8x16xbf16>
    "tpu.trace_start"() <{level = 10 : i32, message = "qd,kd->qk"}> : () -> ()
    %cst_103 = arith.constant dense<0.000000e+00> : vector<8x8xf32>
    %233 = tpu.matmul %231, %232, %cst_103 {dimension_numbers = #tpu.dot_dimension_numbers<[1], [1], [0], [0], [0, 0, 1, 0], [], []>} : vector<8x16xbf16>, vector<8x16xbf16>, vector<8x8xf32> -> vector<8x8xf32>
    "tpu.trace_stop"() : () -> ()
    %cst_104 = arith.constant 2.500000e-01 : f32
    %234 = vector.broadcast %cst_104 : f32 to vector<8x8xf32>
    %235 = arith.mulf %233, %234 : vector<8x8xf32>
    %236 = vector.broadcast %227 : vector<1x8xf32> to vector<8x8xf32>
    %237 = arith.addf %235, %236 : vector<8x8xf32>
    %cst_105 = arith.constant dense<0xFF800000> : vector<8xf32>
    %238 = vector.multi_reduction <maximumf>, %237, %cst_105 [1] : vector<8x8xf32> to vector<8xf32>
    %239 = vector.shape_cast %238 : vector<8xf32> to vector<8x1xf32>
    %240 = vector.broadcast %239 : vector<8x1xf32> to vector<8x8xf32>
    %241 = arith.subf %237, %240 : vector<8x8xf32>
    %242 = math.exp %241 : vector<8x8xf32>
    %cst_106 = arith.constant dense<0.000000e+00> : vector<8xf32>
    %243 = vector.multi_reduction <add>, %242, %cst_106 [1] : vector<8x8xf32> to vector<8xf32>
    %244 = vector.shape_cast %243 : vector<8xf32> to vector<8x1xf32>
    %245 = vector.broadcast %244 : vector<8x1xf32> to vector<8x8xf32>
    %246 = arith.divf %242, %245 : vector<8x8xf32>
    %247 = arith.truncf %246 : vector<8x8xf32> to vector<8x8xbf16>
    %248 = arith.truncf %230 : vector<8x16xf32> to vector<8x16xbf16>
    %cst_107 = arith.constant dense<0.000000e+00> : vector<8x16xf32>
    %249 = tpu.matmul %247, %248, %cst_107 {dimension_numbers = #tpu.dot_dimension_numbers<[1], [0], [0], [1], [0, 0, 1, 1], [], []>} : vector<8x8xbf16>, vector<8x16xbf16>, vector<8x16xf32> -> vector<8x16xf32>
    %c0_108 = arith.constant 0 : index
    %c0_109 = arith.constant 0 : index
    %250 = vector.load %arg21[%c0_108, %c0_109] : memref<16x32xf32, #tpu.memory_space<vmem>>, vector<8x16xf32>
    tpu.vector_store %arg21[%c0_108, %c0_109], %249 {strides = array<i32>} : memref<16x32xf32, #tpu.memory_space<vmem>>, vector<8x16xf32>,
    %251 = vector.extract_strided_slice %226 {offsets = [0, 16], sizes = [8, 16], strides = [1, 1]} : vector<16x96xf32> to vector<8x16xf32>
    %252 = vector.extract_strided_slice %226 {offsets = [0, 48], sizes = [8, 16], strides = [1, 1]} : vector<16x96xf32> to vector<8x16xf32>
    %253 = vector.extract_strided_slice %226 {offsets = [0, 80], sizes = [8, 16], strides = [1, 1]} : vector<16x96xf32> to vector<8x16xf32>
    %254 = arith.truncf %251 : vector<8x16xf32> to vector<8x16xbf16>
    %255 = arith.truncf %252 : vector<8x16xf32> to vector<8x16xbf16>
    "tpu.trace_start"() <{level = 10 : i32, message = "qd,kd->qk"}> : () -> ()
    %cst_110 = arith.constant dense<0.000000e+00> : vector<8x8xf32>
    %256 = tpu.matmul %254, %255, %cst_110 {dimension_numbers = #tpu.dot_dimension_numbers<[1], [1], [0], [0], [0, 0, 1, 0], [], []>} : vector<8x16xbf16>, vector<8x16xbf16>, vector<8x8xf32> -> vector<8x8xf32>
    "tpu.trace_stop"() : () -> ()
    %cst_111 = arith.constant 2.500000e-01 : f32
    %257 = vector.broadcast %cst_111 : f32 to vector<8x8xf32>
    %258 = arith.mulf %256, %257 : vector<8x8xf32>
    %259 = vector.broadcast %227 : vector<1x8xf32> to vector<8x8xf32>
    %260 = arith.addf %258, %259 : vector<8x8xf32>
    %cst_112 = arith.constant dense<0xFF800000> : vector<8xf32>
    %261 = vector.multi_reduction <maximumf>, %260, %cst_112 [1] : vector<8x8xf32> to vector<8xf32>
    %262 = vector.shape_cast %261 : vector<8xf32> to vector<8x1xf32>
    %263 = vector.broadcast %262 : vector<8x1xf32> to vector<8x8xf32>
    %264 = arith.subf %260, %263 : vector<8x8xf32>
    %265 = math.exp %264 : vector<8x8xf32>
    %cst_113 = arith.constant dense<0.000000e+00> : vector<8xf32>
    %266 = vector.multi_reduction <add>, %265, %cst_113 [1] : vector<8x8xf32> to vector<8xf32>
    %267 = vector.shape_cast %266 : vector<8xf32> to vector<8x1xf32>
    %268 = vector.broadcast %267 : vector<8x1xf32> to vector<8x8xf32>
    %269 = arith.divf %265, %268 : vector<8x8xf32>
    %270 = arith.truncf %269 : vector<8x8xf32> to vector<8x8xbf16>
    %271 = arith.truncf %253 : vector<8x16xf32> to vector<8x16xbf16>
    %cst_114 = arith.constant dense<0.000000e+00> : vector<8x16xf32>
    %272 = tpu.matmul %270, %271, %cst_114 {dimension_numbers = #tpu.dot_dimension_numbers<[1], [0], [0], [1], [0, 0, 1, 1], [], []>} : vector<8x8xbf16>, vector<8x16xbf16>, vector<8x16xf32> -> vector<8x16xf32>
    %c0_115 = arith.constant 0 : index
    %c16_116 = arith.constant 16 : index
    %273 = vector.load %arg21[%c0_115, %c16_116] : memref<16x32xf32, #tpu.memory_space<vmem>>, vector<8x16xf32>
    tpu.vector_store %arg21[%c0_115, %c16_116], %272 {strides = array<i32>} : memref<16x32xf32, #tpu.memory_space<vmem>>, vector<8x16xf32>,
    %c1_117 = arith.constant 1 : index
    %c0_118 = arith.constant 0 : index
    %274 = vector.load %arg1[%c1_117, %c0_118] : memref<2x8xf32, #tpu.memory_space<vmem>>, vector<1x8xf32>
    %275 = vector.extract_strided_slice %226 {offsets = [8, 0], sizes = [8, 16], strides = [1, 1]} : vector<16x96xf32> to vector<8x16xf32>
    %276 = vector.extract_strided_slice %226 {offsets = [8, 32], sizes = [8, 16], strides = [1, 1]} : vector<16x96xf32> to vector<8x16xf32>
    %277 = vector.extract_strided_slice %226 {offsets = [8, 64], sizes = [8, 16], strides = [1, 1]} : vector<16x96xf32> to vector<8x16xf32>
    %278 = arith.truncf %275 : vector<8x16xf32> to vector<8x16xbf16>
    %279 = arith.truncf %276 : vector<8x16xf32> to vector<8x16xbf16>
    "tpu.trace_start"() <{level = 10 : i32, message = "qd,kd->qk"}> : () -> ()
    %cst_119 = arith.constant dense<0.000000e+00> : vector<8x8xf32>
    %280 = tpu.matmul %278, %279, %cst_119 {dimension_numbers = #tpu.dot_dimension_numbers<[1], [1], [0], [0], [0, 0, 1, 0], [], []>} : vector<8x16xbf16>, vector<8x16xbf16>, vector<8x8xf32> -> vector<8x8xf32>
    "tpu.trace_stop"() : () -> ()
    %cst_120 = arith.constant 2.500000e-01 : f32
    %281 = vector.broadcast %cst_120 : f32 to vector<8x8xf32>
    %282 = arith.mulf %280, %281 : vector<8x8xf32>
    %283 = vector.broadcast %274 : vector<1x8xf32> to vector<8x8xf32>
    %284 = arith.addf %282, %283 : vector<8x8xf32>
    %cst_121 = arith.constant dense<0xFF800000> : vector<8xf32>
    %285 = vector.multi_reduction <maximumf>, %284, %cst_121 [1] : vector<8x8xf32> to vector<8xf32>
    %286 = vector.shape_cast %285 : vector<8xf32> to vector<8x1xf32>
    %287 = vector.broadcast %286 : vector<8x1xf32> to vector<8x8xf32>
    %288 = arith.subf %284, %287 : vector<8x8xf32>
    %289 = math.exp %288 : vector<8x8xf32>
    %cst_122 = arith.constant dense<0.000000e+00> : vector<8xf32>
    %290 = vector.multi_reduction <add>, %289, %cst_122 [1] : vector<8x8xf32> to vector<8xf32>
    %291 = vector.shape_cast %290 : vector<8xf32> to vector<8x1xf32>
    %292 = vector.broadcast %291 : vector<8x1xf32> to vector<8x8xf32>
    %293 = arith.divf %289, %292 : vector<8x8xf32>
    %294 = arith.truncf %293 : vector<8x8xf32> to vector<8x8xbf16>
    %295 = arith.truncf %277 : vector<8x16xf32> to vector<8x16xbf16>
    %cst_123 = arith.constant dense<0.000000e+00> : vector<8x16xf32>
    %296 = tpu.matmul %294, %295, %cst_123 {dimension_numbers = #tpu.dot_dimension_numbers<[1], [0], [0], [1], [0, 0, 1, 1], [], []>} : vector<8x8xbf16>, vector<8x16xbf16>, vector<8x16xf32> -> vector<8x16xf32>
    %c8_124 = arith.constant 8 : index
    %c0_125 = arith.constant 0 : index
    %297 = vector.load %arg21[%c8_124, %c0_125] : memref<16x32xf32, #tpu.memory_space<vmem>>, vector<8x16xf32>
    tpu.vector_store %arg21[%c8_124, %c0_125], %296 {strides = array<i32>} : memref<16x32xf32, #tpu.memory_space<vmem>>, vector<8x16xf32>,
    %298 = vector.extract_strided_slice %226 {offsets = [8, 16], sizes = [8, 16], strides = [1, 1]} : vector<16x96xf32> to vector<8x16xf32>
    %299 = vector.extract_strided_slice %226 {offsets = [8, 48], sizes = [8, 16], strides = [1, 1]} : vector<16x96xf32> to vector<8x16xf32>
    %300 = vector.extract_strided_slice %226 {offsets = [8, 80], sizes = [8, 16], strides = [1, 1]} : vector<16x96xf32> to vector<8x16xf32>
    %301 = arith.truncf %298 : vector<8x16xf32> to vector<8x16xbf16>
    %302 = arith.truncf %299 : vector<8x16xf32> to vector<8x16xbf16>
    "tpu.trace_start"() <{level = 10 : i32, message = "qd,kd->qk"}> : () -> ()
    %cst_126 = arith.constant dense<0.000000e+00> : vector<8x8xf32>
    %303 = tpu.matmul %301, %302, %cst_126 {dimension_numbers = #tpu.dot_dimension_numbers<[1], [1], [0], [0], [0, 0, 1, 0], [], []>} : vector<8x16xbf16>, vector<8x16xbf16>, vector<8x8xf32> -> vector<8x8xf32>
    "tpu.trace_stop"() : () -> ()
    %cst_127 = arith.constant 2.500000e-01 : f32
    %304 = vector.broadcast %cst_127 : f32 to vector<8x8xf32>
    %305 = arith.mulf %303, %304 : vector<8x8xf32>
    %306 = vector.broadcast %274 : vector<1x8xf32> to vector<8x8xf32>
    %307 = arith.addf %305, %306 : vector<8x8xf32>
    %cst_128 = arith.constant dense<0xFF800000> : vector<8xf32>
    %308 = vector.multi_reduction <maximumf>, %307, %cst_128 [1] : vector<8x8xf32> to vector<8xf32>
    %309 = vector.shape_cast %308 : vector<8xf32> to vector<8x1xf32>
    %310 = vector.broadcast %309 : vector<8x1xf32> to vector<8x8xf32>
    %311 = arith.subf %307, %310 : vector<8x8xf32>
    %312 = math.exp %311 : vector<8x8xf32>
    %cst_129 = arith.constant dense<0.000000e+00> : vector<8xf32>
    %313 = vector.multi_reduction <add>, %312, %cst_129 [1] : vector<8x8xf32> to vector<8xf32>
    %314 = vector.shape_cast %313 : vector<8xf32> to vector<8x1xf32>
    %315 = vector.broadcast %314 : vector<8x1xf32> to vector<8x8xf32>
    %316 = arith.divf %312, %315 : vector<8x8xf32>
    %317 = arith.truncf %316 : vector<8x8xf32> to vector<8x8xbf16>
    %318 = arith.truncf %300 : vector<8x16xf32> to vector<8x16xbf16>
    %cst_130 = arith.constant dense<0.000000e+00> : vector<8x16xf32>
    %319 = tpu.matmul %317, %318, %cst_130 {dimension_numbers = #tpu.dot_dimension_numbers<[1], [0], [0], [1], [0, 0, 1, 1], [], []>} : vector<8x8xbf16>, vector<8x16xbf16>, vector<8x16xf32> -> vector<8x16xf32>
    %c8_131 = arith.constant 8 : index
    %c16_132 = arith.constant 16 : index
    %320 = vector.load %arg21[%c8_131, %c16_132] : memref<16x32xf32, #tpu.memory_space<vmem>>, vector<8x16xf32>
    tpu.vector_store %arg21[%c8_131, %c16_132], %319 {strides = array<i32>} : memref<16x32xf32, #tpu.memory_space<vmem>>, vector<8x16xf32>,
    %c0_133 = arith.constant 0 : index
    %c0_134 = arith.constant 0 : index
    %321 = vector.load %arg21[%c0_133, %c0_134] : memref<16x32xf32, #tpu.memory_space<vmem>>, vector<16x32xf32>
    %322 = arith.truncf %321 : vector<16x32xf32> to vector<16x32xbf16>
    %c1_135 = arith.constant 1 : index
    %c0_136 = arith.constant 0 : index
    %c0_137 = arith.constant 0 : index
    %323 = vector.load %arg8[%c1_135, %c0_136, %c0_137] : memref<2x32x32xbf16, #tpu.memory_space<vmem>>, vector<1x32x32xbf16>
    %324 = vector.shape_cast %323 : vector<1x32x32xbf16> to vector<32x32xbf16>
    %cst_138 = arith.constant dense<0.000000e+00> : vector<16x32xf32>
    %325 = tpu.matmul %322, %324, %cst_138 {dimension_numbers = #tpu.dot_dimension_numbers<[1], [0], [0], [1], [0, 0, 1, 1], [], []>} : vector<16x32xbf16>, vector<32x32xbf16>, vector<16x32xf32> -> vector<16x32xf32>
    %c1_139 = arith.constant 1 : index
    %c0_140 = arith.constant 0 : index
    %c0_141 = arith.constant 0 : index
    %326 = vector.load %arg9[%c1_139, %c0_140, %c0_141] : memref<2x1x32xf32, #tpu.memory_space<vmem>>, vector<1x1x32xf32>
    %327 = vector.shape_cast %326 : vector<1x1x32xf32> to vector<1x32xf32>
    %328 = vector.broadcast %327 : vector<1x32xf32> to vector<16x32xf32>
    %329 = arith.addf %325, %328 : vector<16x32xf32>
    %330 = arith.addf %218, %329 : vector<16x32xf32>
    %c1_142 = arith.constant 1 : index
    %c0_143 = arith.constant 0 : index
    %c0_144 = arith.constant 0 : index
    %331 = vector.load %arg10[%c1_142, %c0_143, %c0_144] : memref<2x1x32xf32, #tpu.memory_space<vmem>>, vector<1x1x32xf32>
    %332 = vector.shape_cast %331 : vector<1x1x32xf32> to vector<1x32xf32>
    %c1_145 = arith.constant 1 : index
    %c0_146 = arith.constant 0 : index
    %c0_147 = arith.constant 0 : index
    %333 = vector.load %arg11[%c1_145, %c0_146, %c0_147] : memref<2x1x32xf32, #tpu.memory_space<vmem>>, vector<1x1x32xf32>
    %334 = vector.shape_cast %333 : vector<1x1x32xf32> to vector<1x32xf32>
    %cst_148 = arith.constant dense<0.000000e+00> : vector<16xf32>
    %335 = vector.multi_reduction <add>, %330, %cst_148 [1] : vector<16x32xf32> to vector<16xf32>
    %336 = vector.shape_cast %335 : vector<16xf32> to vector<16x1xf32>
    %cst_149 = arith.constant 3.200000e+01 : f32
    %337 = vector.broadcast %cst_149 : f32 to vector<16x1xf32>
    %338 = arith.divf %336, %337 : vector<16x1xf32>
    %339 = vector.broadcast %338 : vector<16x1xf32> to vector<16x32xf32>
    %340 = arith.subf %330, %339 : vector<16x32xf32>
    %341 = arith.mulf %340, %340 : vector<16x32xf32>
    %cst_150 = arith.constant dense<0.000000e+00> : vector<16xf32>
    %342 = vector.multi_reduction <add>, %341, %cst_150 [1] : vector<16x32xf32> to vector<16xf32>
    %343 = vector.shape_cast %342 : vector<16xf32> to vector<16x1xf32>
    %cst_151 = arith.constant 3.200000e+01 : f32
    %344 = vector.broadcast %cst_151 : f32 to vector<16x1xf32>
    %345 = arith.divf %343, %344 : vector<16x1xf32>
    %346 = vector.broadcast %338 : vector<16x1xf32> to vector<16x32xf32>
    %347 = arith.subf %330, %346 : vector<16x32xf32>
    %cst_152 = arith.constant 1.000000e-07 : f32
    %348 = vector.broadcast %cst_152 : f32 to vector<16x1xf32>
    %349 = arith.addf %345, %348 : vector<16x1xf32>
    %350 = math.rsqrt %349 : vector<16x1xf32>
    %351 = vector.broadcast %350 : vector<16x1xf32> to vector<16x32xf32>
    %352 = arith.mulf %347, %351 : vector<16x32xf32>
    %353 = vector.broadcast %332 : vector<1x32xf32> to vector<16x32xf32>
    %354 = arith.mulf %352, %353 : vector<16x32xf32>
    %355 = vector.broadcast %334 : vector<1x32xf32> to vector<16x32xf32>
    %356 = arith.addf %354, %355 : vector<16x32xf32>
    %357 = arith.truncf %356 : vector<16x32xf32> to vector<16x32xbf16>
    %c1_153 = arith.constant 1 : index
    %c0_154 = arith.constant 0 : index
    %c0_155 = arith.constant 0 : index
    %358 = vector.load %arg12[%c1_153, %c0_154, %c0_155] : memref<2x32x64xbf16, #tpu.memory_space<vmem>>, vector<1x32x64xbf16>
    %359 = vector.shape_cast %358 : vector<1x32x64xbf16> to vector<32x64xbf16>
    %cst_156 = arith.constant dense<0.000000e+00> : vector<16x64xf32>
    %360 = tpu.matmul %357, %359, %cst_156 {dimension_numbers = #tpu.dot_dimension_numbers<[1], [0], [0], [1], [0, 0, 1, 1], [], []>} : vector<16x32xbf16>, vector<32x64xbf16>, vector<16x64xf32> -> vector<16x64xf32>
    %c1_157 = arith.constant 1 : index
    %c0_158 = arith.constant 0 : index
    %c0_159 = arith.constant 0 : index
    %361 = vector.load %arg13[%c1_157, %c0_158, %c0_159] : memref<2x1x64xf32, #tpu.memory_space<vmem>>, vector<1x1x64xf32>
    %362 = vector.shape_cast %361 : vector<1x1x64xf32> to vector<1x64xf32>
    %363 = vector.broadcast %362 : vector<1x64xf32> to vector<16x64xf32>
    %364 = arith.addf %360, %363 : vector<16x64xf32>
    %365 = arith.mulf %364, %364 : vector<16x64xf32>
    %366 = arith.mulf %364, %365 : vector<16x64xf32>
    %cst_160 = arith.constant 4.471500e-02 : f32
    %367 = vector.broadcast %cst_160 : f32 to vector<16x64xf32>
    %368 = arith.mulf %367, %366 : vector<16x64xf32>
    %369 = arith.addf %364, %368 : vector<16x64xf32>
    %cst_161 = arith.constant 0.797884583 : f32
    %370 = vector.broadcast %cst_161 : f32 to vector<16x64xf32>
    %371 = arith.mulf %370, %369 : vector<16x64xf32>
    %372 = math.tanh %371 : vector<16x64xf32>
    %cst_162 = arith.constant 1.000000e+00 : f32
    %373 = vector.broadcast %cst_162 : f32 to vector<16x64xf32>
    %374 = arith.addf %373, %372 : vector<16x64xf32>
    %cst_163 = arith.constant 5.000000e-01 : f32
    %375 = vector.broadcast %cst_163 : f32 to vector<16x64xf32>
    %376 = arith.mulf %375, %374 : vector<16x64xf32>
    %377 = arith.mulf %364, %376 : vector<16x64xf32>
    %378 = arith.truncf %377 : vector<16x64xf32> to vector<16x64xbf16>
    %c1_164 = arith.constant 1 : index
    %c0_165 = arith.constant 0 : index
    %c0_166 = arith.constant 0 : index
    %379 = vector.load %arg14[%c1_164, %c0_165, %c0_166] : memref<2x64x32xbf16, #tpu.memory_space<vmem>>, vector<1x64x32xbf16>
    %380 = vector.shape_cast %379 : vector<1x64x32xbf16> to vector<64x32xbf16>
    %cst_167 = arith.constant dense<0.000000e+00> : vector<16x32xf32>
    %381 = tpu.matmul %378, %380, %cst_167 {dimension_numbers = #tpu.dot_dimension_numbers<[1], [0], [0], [1], [0, 0, 1, 1], [], []>} : vector<16x64xbf16>, vector<64x32xbf16>, vector<16x32xf32> -> vector<16x32xf32>
    %c1_168 = arith.constant 1 : index
    %c0_169 = arith.constant 0 : index
    %c0_170 = arith.constant 0 : index
    %382 = vector.load %arg15[%c1_168, %c0_169, %c0_170] : memref<2x1x32xf32, #tpu.memory_space<vmem>>, vector<1x1x32xf32>
    %383 = vector.shape_cast %382 : vector<1x1x32xf32> to vector<1x32xf32>
    %384 = vector.broadcast %383 : vector<1x32xf32> to vector<16x32xf32>
    %385 = arith.addf %381, %384 : vector<16x32xf32>
    %386 = arith.addf %356, %385 : vector<16x32xf32>
    %c1_171 = arith.constant 1 : index
    %c0_172 = arith.constant 0 : index
    %c0_173 = arith.constant 0 : index
    %387 = vector.load %arg16[%c1_171, %c0_172, %c0_173] : memref<2x1x32xf32, #tpu.memory_space<vmem>>, vector<1x1x32xf32>
    %388 = vector.shape_cast %387 : vector<1x1x32xf32> to vector<1x32xf32>
    %c1_174 = arith.constant 1 : index
    %c0_175 = arith.constant 0 : index
    %c0_176 = arith.constant 0 : index
    %389 = vector.load %arg17[%c1_174, %c0_175, %c0_176] : memref<2x1x32xf32, #tpu.memory_space<vmem>>, vector<1x1x32xf32>
    %390 = vector.shape_cast %389 : vector<1x1x32xf32> to vector<1x32xf32>
    %cst_177 = arith.constant dense<0.000000e+00> : vector<16xf32>
    %391 = vector.multi_reduction <add>, %386, %cst_177 [1] : vector<16x32xf32> to vector<16xf32>
    %392 = vector.shape_cast %391 : vector<16xf32> to vector<16x1xf32>
    %cst_178 = arith.constant 3.200000e+01 : f32
    %393 = vector.broadcast %cst_178 : f32 to vector<16x1xf32>
    %394 = arith.divf %392, %393 : vector<16x1xf32>
    %395 = vector.broadcast %394 : vector<16x1xf32> to vector<16x32xf32>
    %396 = arith.subf %386, %395 : vector<16x32xf32>
    %397 = arith.mulf %396, %396 : vector<16x32xf32>
    %cst_179 = arith.constant dense<0.000000e+00> : vector<16xf32>
    %398 = vector.multi_reduction <add>, %397, %cst_179 [1] : vector<16x32xf32> to vector<16xf32>
    %399 = vector.shape_cast %398 : vector<16xf32> to vector<16x1xf32>
    %cst_180 = arith.constant 3.200000e+01 : f32
    %400 = vector.broadcast %cst_180 : f32 to vector<16x1xf32>
    %401 = arith.divf %399, %400 : vector<16x1xf32>
    %402 = vector.broadcast %394 : vector<16x1xf32> to vector<16x32xf32>
    %403 = arith.subf %386, %402 : vector<16x32xf32>
    %cst_181 = arith.constant 1.000000e-07 : f32
    %404 = vector.broadcast %cst_181 : f32 to vector<16x1xf32>
    %405 = arith.addf %401, %404 : vector<16x1xf32>
    %406 = math.rsqrt %405 : vector<16x1xf32>
    %407 = vector.broadcast %406 : vector<16x1xf32> to vector<16x32xf32>
    %408 = arith.mulf %403, %407 : vector<16x32xf32>
    %409 = vector.broadcast %388 : vector<1x32xf32> to vector<16x32xf32>
    %410 = arith.mulf %408, %409 : vector<16x32xf32>
    %411 = vector.broadcast %390 : vector<1x32xf32> to vector<16x32xf32>
    %412 = arith.addf %410, %411 : vector<16x32xf32>
    %c0_182 = arith.constant 0 : index
    %c0_183 = arith.constant 0 : index
    %413 = vector.load %arg18[%c0_182, %c0_183] : memref<16x32xf32, #tpu.memory_space<vmem>>, vector<16x32xf32>
    tpu.vector_store %arg18[%c0_182, %c0_183], %412 {strides = array<i32>} : memref<16x32xf32, #tpu.memory_space<vmem>>, vector<16x32xf32>,
    %c0_184 = arith.constant 0 : index
    %c0_185 = arith.constant 0 : index
    %414 = vector.load %arg2[%c0_184, %c0_185] : memref<2x16xf32, #tpu.memory_space<vmem>>, vector<2x16xf32>
    %cst_186 = arith.constant dense<0.000000e+00> : vector<2x32xf32>
    %415 = tpu.matmul %414, %412, %cst_186 {dimension_numbers = #tpu.dot_dimension_numbers<[1], [0], [0], [1], [0, 0, 1, 1], [], []>} : vector<2x16xf32>, vector<16x32xf32>, vector<2x32xf32> -> vector<2x32xf32>
    %c0_187 = arith.constant 0 : index
    %c0_188 = arith.constant 0 : index
    %416 = vector.load %arg19[%c0_187, %c0_188] : memref<2x32xf32, #tpu.memory_space<vmem>>, vector<2x32xf32>
    tpu.vector_store %arg19[%c0_187, %c0_188], %415 {strides = array<i32>} : memref<2x32xf32, #tpu.memory_space<vmem>>, vector<2x32xf32>,
    %c0_189 = arith.constant 0 : index
    %c0_190 = arith.constant 0 : index
    %417 = vector.load %arg3[%c0_189, %c0_190] : memref<6x16xf32, #tpu.memory_space<vmem>>, vector<6x16xf32>
    %cst_191 = arith.constant dense<0.000000e+00> : vector<6x32xf32>
    %418 = tpu.matmul %417, %412, %cst_191 {dimension_numbers = #tpu.dot_dimension_numbers<[1], [0], [0], [1], [0, 0, 1, 1], [], []>} : vector<6x16xf32>, vector<16x32xf32>, vector<6x32xf32> -> vector<6x32xf32>
    %c0_192 = arith.constant 0 : index
    %c0_193 = arith.constant 0 : index
    %419 = vector.load %arg20[%c0_192, %c0_193] : memref<6x32xf32, #tpu.memory_space<vmem>>, vector<6x32xf32>
    tpu.vector_store %arg20[%c0_192, %c0_193], %418 {strides = array<i32>} : memref<6x32xf32, #tpu.memory_space<vmem>>, vector<6x32xf32>,
    return
  }
}

</mosaic_0001>

<llo_original>
// kernel: encode_and_prep.3
$region0: #{encode_and_prep.3}
  #allocation0 [shape = 'u32[]', space=smem, size = 0x4, offset = 0x4, fixed_abs, tag = 'smem constant byte address 0x4 - core index']
  #allocation1 [shape = 'u32[72,128]{1,0:T(1,128)}', space=vmem, size = 0x9000, scoped, tag = 'internal scratch']
  %s0 = inlined_call_operand.vmem [shape: f32[16,32], index: 0, kind: input, shape index: {}]
  %s1 = inlined_call_operand.vmem [shape: f32[10,32], index: 1, kind: input, shape index: {}]
  %s2 = inlined_call_operand.vmem [shape: bf16[32,32], index: 2, kind: input, shape index: {}]
  %s3 = inlined_call_operand.vmem [shape: bf16[32,32], index: 3, kind: input, shape index: {}]
  %s4 = inlined_call_operand.hbm [shape: f32[10,32], index: 4, kind: output, shape index: {0}]
  %s5 = inlined_call_operand.hbm [shape: f32[16,32], index: 5, kind: output, shape index: {1}]
  %6 = xla_tuple %s4, %s5
  %s7 = sld [smem:[#allocation0]]
  $region34: #{encode_and_prep.3} parent=0
    _
  %s9 = ssub.s32 1, %s7
  %s10 = scalar_select 0, %s9, %s7
  $region1: #{encode_and_prep.3} parent=0
    #allocation2 [shape = 'u8[8192]{0}', space=vmem, size = 0x2000, scoped, tag = 'output window, operand 0, single buffered']
    #allocation3 [shape = 's32[1]{0}', space=sflag, size = 0x4, scoped, tag = 'scoped memory for encode_and_prep.3']
    #allocation4 [shape = 'u8[8192]{0}', space=vmem, size = 0x2000, scoped, tag = 'output window, operand 1, single buffered']
    #allocation5 [shape = 's32[1]{0}', space=sflag, size = 0x4, scoped, tag = 'scoped memory for encode_and_prep.3']
    %11 = vsyncpa [#allocation3], 0
    %12 = vsyncpa [#allocation5], 0
    // Predicated region
    $region2: #{encode_and_prep.3} parent=1 // pred_check
      _
    $region3: #{encode_and_prep.3} parent=1 // pred_check_branch
      %14 = sbr.rel (0) target = $region5
    $region4: #{encode_and_prep.3} parent=1 // pred_region
      _
    $region5: #{encode_and_prep.3} parent=1 // pred_fallthru
      _
    // Predicated region
    $region6: #{encode_and_prep.3} parent=1 // pred_check
      _
    $region7: #{encode_and_prep.3} parent=1 // pred_check_branch
      %16 = sbr.rel (0) target = $region9
    $region8: #{encode_and_prep.3} parent=1 // pred_region
      _
    $region9: #{encode_and_prep.3} parent=1 // pred_fallthru
      _
    // Predicated region
    $region10: #{encode_and_prep.3} parent=1 // pred_check
      _
    $region11: #{encode_and_prep.3} parent=1 // pred_check_branch
      %18 = sbr.rel (0) target = $region13
    $region12: #{encode_and_prep.3} parent=1 // pred_region
      _
    $region13: #{encode_and_prep.3} parent=1 // pred_fallthru
      _
    // Predicated region
    $region14: #{encode_and_prep.3} parent=1 // pred_check
      _
    $region15: #{encode_and_prep.3} parent=1 // pred_check_branch
      %20 = sbr.rel (0) target = $region17
    $region16: #{encode_and_prep.3} parent=1 // pred_region
      _
    $region17: #{encode_and_prep.3} parent=1 // pred_fallthru
      _
    %v22 = vld [vmem:[%s1] sm:$0xff]
    %v23 = vld [vmem:[%s1 + $0x8] sm:$0x3]
    %v24 = vpack.c.bf16 %v23, %v22
    %v25 = vld [vmem:[%s3] sm:$0xf]
    %v26 = vld [vmem:[%s3 + $0x4] sm:$0xf]
    %v27 = vld [vmem:[%s3 + $0x8] sm:$0xf]
    %v28 = vld [vmem:[%s3 + $0xc] sm:$0xf]
    %v33 = vunpack.c.l.b16 %v25
    %v34 = vunpack.c.l.b16 %v26
    %v35 = vunpack.c.l.b16 %v27
    %v36 = vunpack.c.l.b16 %v28
    %v37 = vpack.c.b16 %v34, %v33
    %v38 = vpack.c.b16 %v36, %v35
    %vm41 = vcmask 261120
    %v43 = vsel %vm41, %v24, 0
    %45 = vmatpush.bf16.msra.mxu0 0
    %46 = vmatpush.bf16.msra.mxu0 0
    %47 = vmatpush.bf16.msra.mxu0 0
    %48 = vmatpush.bf16.msra.mxu0 0
    %49 = vmatpush.bf16.msra.mxu0 0
    %50 = vmatpush.bf16.msra.mxu0 0
    %51 = vmatpush.bf16.msra.mxu0 %v38
    %52 = vmatpush.bf16.msra.mxu0 %v37
    %53 = vmatmul.bf16.gmra.mxu0 %v43
    %v54 = vpop.f32.mrf.mxu0
    %v55 = vadd.f32 0.0, %v54
    %v56 = vpop.f32.mrf.mxu0
    %v57 = vadd.f32 0.0, %v56
    %58 = vdwg.mxu0
    %59 = vst.msk [vmem:[#allocation2] sm:$0xff] %vm41, %v55
    %vm60 = vcmask 254976
    %61 = vst.msk [vmem:[#allocation2 + $0x8] sm:$0x3] %vm60, %v57
    %v62 = vld [vmem:[%s0] sm:$0xff]
    %v63 = vld [vmem:[%s0 + $0x8] sm:$0xff]
    %v64 = vpack.c.bf16 %v63, %v62
    %v65 = vld [vmem:[%s2] sm:$0xf]
    %v66 = vld [vmem:[%s2 + $0x4] sm:$0xf]
    %v67 = vld [vmem:[%s2 + $0x8] sm:$0xf]
    %v68 = vld [vmem:[%s2 + $0xc] sm:$0xf]
    %v73 = vunpack.c.l.b16 %v65
    %v74 = vunpack.c.l.b16 %v66
    %v75 = vunpack.c.l.b16 %v67
    %v76 = vunpack.c.l.b16 %v68
    %v77 = vpack.c.b16 %v74, %v73
    %v78 = vpack.c.b16 %v76, %v75
    %v82 = vsel %vm41, %v64, 0
    %84 = vmatpush.bf16.msra.mxu0 0
    %85 = vmatpush.bf16.msra.mxu0 0
    %86 = vmatpush.bf16.msra.mxu0 0
    %87 = vmatpush.bf16.msra.mxu0 0
    %88 = vmatpush.bf16.msra.mxu0 0
    %89 = vmatpush.bf16.msra.mxu0 0
    %90 = vmatpush.bf16.msra.mxu0 %v78
    %91 = vmatpush.bf16.msra.mxu0 %v77
    %92 = vmatmul.bf16.gmra.mxu0 %v82
    %v93 = vpop.f32.mrf.mxu0
    %v94 = vadd.f32 0.0, %v93
    %v95 = vpop.f32.mrf.mxu0
    %v96 = vadd.f32 0.0, %v95
    %97 = vdwg.mxu0
    %98 = vst.msk [vmem:[#allocation4] sm:$0xff] %vm41, %v94
    %99 = vst.msk [vmem:[#allocation4 + $0x8] sm:$0xff] %vm41, %v96
    // Predicated region
    $region18: #{encode_and_prep.3} parent=1 // pred_check
      _
    $region19: #{encode_and_prep.3} parent=1 // pred_check_branch
      %101 = sbr.rel (0) target = $region21
    $region20: #{encode_and_prep.3} parent=1 // pred_region
      %103 = vsyncadd [#allocation3], 0
      %s104 = sshll.u32 [#allocation2], 4
      %s105 = int_to_ptr.vmem [resolvable:$true] %s104
      %s106 = sshll.u32 %s4, 4
      %s107 = int_to_ptr.hbm [resolvable:$true] %s106
      %112 = dma.vmem_to_hbm [thread:$0]  %s105, 256, %s107, [#allocation3], 128, 128, 8
    $region21: #{encode_and_prep.3} parent=1 // pred_fallthru
      _
    // Predicated region
    $region22: #{encode_and_prep.3} parent=1 // pred_check
      _
    $region23: #{encode_and_prep.3} parent=1 // pred_check_branch
      %114 = sbr.rel (0) target = $region25
    $region24: #{encode_and_prep.3} parent=1 // pred_region
      %116 = vsyncadd [#allocation5], 0
      %s117 = sshll.u32 [#allocation4], 4
      %s118 = int_to_ptr.vmem [resolvable:$true] %s117
      %s119 = sshll.u32 %s5, 4
      %s120 = int_to_ptr.hbm [resolvable:$true] %s119
      %125 = dma.vmem_to_hbm [thread:$0]  %s118, 256, %s120, [#allocation5], 128, 128, 8
    $region25: #{encode_and_prep.3} parent=1 // pred_fallthru
      _
    // Predicated region
    $region26: #{encode_and_prep.3} parent=1 // pred_check
      _
    $region27: #{encode_and_prep.3} parent=1 // pred_check_branch
      %127 = sbr.rel (0) target = $region29
    $region28: #{encode_and_prep.3} parent=1 // pred_region
      %129 = dma.done [#allocation3], 256
    $region29: #{encode_and_prep.3} parent=1 // pred_fallthru
      _
    // Predicated region
    $region30: #{encode_and_prep.3} parent=1 // pred_check
      _
    $region31: #{encode_and_prep.3} parent=1 // pred_check_branch
      %131 = sbr.rel (0) target = $region33
    $region32: #{encode_and_prep.3} parent=1 // pred_region
      %133 = dma.done [#allocation5], 256
    $region33: #{encode_and_prep.3} parent=1 // pred_fallthru
      _
    %134 = vsyncpa [#allocation3], 1
    %135 = vsyncpa [#allocation5], 1

// kernel: encode_and_prep.2
$region0: #{encode_and_prep.2}
  #allocation0 [shape = 'u32[]', space=smem, size = 0x4, offset = 0x4, fixed_abs, tag = 'smem constant byte address 0x4 - core index']
  #allocation1 [shape = 'u32[72,128]{1,0:T(1,128)}', space=vmem, size = 0x9000, scoped, tag = 'internal scratch']
  #allocation2 [shape = 'f32[16,32]{1,0:T(8,128)}', space=vmem, size = 0x2000, scoped, tag = 'scratch operand']
  %s0 = inlined_call_operand.vmem [shape: f32[16,32], index: 0, kind: input, shape index: {}]
  %s1 = inlined_call_operand.vmem [shape: f32[2,8], index: 1, kind: input, shape index: {}]
  %s2 = inlined_call_operand.vmem [shape: f32[2,16], index: 2, kind: input, shape index: {}]
  %s3 = inlined_call_operand.vmem [shape: f32[6,16], index: 3, kind: input, shape index: {}]
  %s4 = inlined_call_operand.vmem [shape: f32[1,32], index: 4, kind: input, shape index: {}]
  %s5 = inlined_call_operand.vmem [shape: f32[1,32], index: 5, kind: input, shape index: {}]
  %s6 = inlined_call_operand.vmem [shape: bf16[2,32,96], index: 6, kind: input, shape index: {}]
  %s7 = inlined_call_operand.vmem [shape: f32[2,1,96], index: 7, kind: input, shape index: {}]
  %s8 = inlined_call_operand.vmem [shape: bf16[2,32,32], index: 8, kind: input, shape index: {}]
  %s9 = inlined_call_operand.vmem [shape: f32[2,1,32], index: 9, kind: input, shape index: {}]
  %s10 = inlined_call_operand.vmem [shape: f32[2,1,32], index: 10, kind: input, shape index: {}]
  %s11 = inlined_call_operand.vmem [shape: f32[2,1,32], index: 11, kind: input, shape index: {}]
  %s12 = inlined_call_operand.vmem [shape: bf16[2,32,64], index: 12, kind: input, shape index: {}]
  %s13 = inlined_call_operand.vmem [shape: f32[2,1,64], index: 13, kind: input, shape index: {}]
  %s14 = inlined_call_operand.vmem [shape: bf16[2,64,32], index: 14, kind: input, shape index: {}]
  %s15 = inlined_call_operand.vmem [shape: f32[2,1,32], index: 15, kind: input, shape index: {}]
  %s16 = inlined_call_operand.vmem [shape: f32[2,1,32], index: 16, kind: input, shape index: {}]
  %s17 = inlined_call_operand.vmem [shape: f32[2,1,32], index: 17, kind: input, shape index: {}]
  %s18 = inlined_call_operand.vmem [shape: f32[16,32], index: 18, kind: output, shape index: {0}]
  %s19 = inlined_call_operand.hbm [shape: f32[2,32], index: 19, kind: output, shape index: {1}]
  %s20 = inlined_call_operand.vmem [shape: f32[6,32], index: 20, kind: output, shape index: {2}]
  %21 = xla_tuple %s18, %s19, %s20
  %s22 = sld [smem:[#allocation0]]
  $region98: #{encode_and_prep.2} parent=0
    _
  %s24 = ssub.s32 1, %s22
  %s25 = scalar_select 0, %s24, %s22
  $region1: #{encode_and_prep.2} parent=0
    #allocation3 [shape = 'u8[1024]{0}', space=vmem, size = 0x400, scoped, tag = 'output window, operand 1, single buffered']
    #allocation4 [shape = 's32[1]{0}', space=sflag, size = 0x4, scoped, tag = 'scoped memory for encode_and_prep.2']
    %26 = vsyncpa [#allocation4], 0
    // Predicated region
    $region2: #{encode_and_prep.2} parent=1 // pred_check
      _
    $region3: #{encode_and_prep.2} parent=1 // pred_check_branch
      %28 = sbr.rel (0) target = $region5
    $region4: #{encode_and_prep.2} parent=1 // pred_region
      _
    $region5: #{encode_and_prep.2} parent=1 // pred_fallthru
      _
    // Predicated region
    $region6: #{encode_and_prep.2} parent=1 // pred_check
      _
    $region7: #{encode_and_prep.2} parent=1 // pred_check_branch
      %30 = sbr.rel (0) target = $region9
    $region8: #{encode_and_prep.2} parent=1 // pred_region
      _
    $region9: #{encode_and_prep.2} parent=1 // pred_fallthru
      _
    // Predicated region
    $region10: #{encode_and_prep.2} parent=1 // pred_check
      _
    $region11: #{encode_and_prep.2} parent=1 // pred_check_branch
      %32 = sbr.rel (0) target = $region13
    $region12: #{encode_and_prep.2} parent=1 // pred_region
      _
    $region13: #{encode_and_prep.2} parent=1 // pred_fallthru
      _
    // Predicated region
    $region14: #{encode_and_prep.2} parent=1 // pred_check
      _
    $region15: #{encode_and_prep.2} parent=1 // pred_check_branch
      %34 = sbr.rel (0) target = $region17
    $region16: #{encode_and_prep.2} parent=1 // pred_region
      _
    $region17: #{encode_and_prep.2} parent=1 // pred_fallthru
      _
    // Predicated region
    $region18: #{encode_and_prep.2} parent=1 // pred_check
      _
    $region19: #{encode_and_prep.2} parent=1 // pred_check_branch
      %36 = sbr.rel (0) target = $region21
    $region20: #{encode_and_prep.2} parent=1 // pred_region
      _
    $region21: #{encode_and_prep.2} parent=1 // pred_fallthru
      _
    // Predicated region
    $region22: #{encode_and_prep.2} parent=1 // pred_check
      _
    $region23: #{encode_and_prep.2} parent=1 // pred_check_branch
      %38 = sbr.rel (0) target = $region25
    $region24: #{encode_and_prep.2} parent=1 // pred_region
      _
    $region25: #{encode_and_prep.2} parent=1 // pred_fallthru
      _
    // Predicated region
    $region26: #{encode_and_prep.2} parent=1 // pred_check
      _
    $region27: #{encode_and_prep.2} parent=1 // pred_check_branch
      %40 = sbr.rel (0) target = $region29
    $region28: #{encode_and_prep.2} parent=1 // pred_region
      _
    $region29: #{encode_and_prep.2} parent=1 // pred_fallthru
      _
    // Predicated region
    $region30: #{encode_and_prep.2} parent=1 // pred_check
      _
    $region31: #{encode_and_prep.2} parent=1 // pred_check_branch
      %42 = sbr.rel (0) target = $region33
    $region32: #{encode_and_prep.2} parent=1 // pred_region
      _
    $region33: #{encode_and_prep.2} parent=1 // pred_fallthru
      _
    // Predicated region
    $region34: #{encode_and_prep.2} parent=1 // pred_check
      _
    $region35: #{encode_and_prep.2} parent=1 // pred_check_branch
      %44 = sbr.rel (0) target = $region37
    $region36: #{encode_and_prep.2} parent=1 // pred_region
      _
    $region37: #{encode_and_prep.2} parent=1 // pred_fallthru
      _
    // Predicated region
    $region38: #{encode_and_prep.2} parent=1 // pred_check
      _
    $region39: #{encode_and_prep.2} parent=1 // pred_check_branch
      %46 = sbr.rel (0) target = $region41
    $region40: #{encode_and_prep.2} parent=1 // pred_region
      _
    $region41: #{encode_and_prep.2} parent=1 // pred_fallthru
      _
    // Predicated region
    $region42: #{encode_and_prep.2} parent=1 // pred_check
      _
    $region43: #{encode_and_prep.2} parent=1 // pred_check_branch
      %48 = sbr.rel (0) target = $region45
    $region44: #{encode_and_prep.2} parent=1 // pred_region
      _
    $region45: #{encode_and_prep.2} parent=1 // pred_fallthru
      _
    // Predicated region
    $region46: #{encode_and_prep.2} parent=1 // pred_check
      _
    $region47: #{encode_and_prep.2} parent=1 // pred_check_branch
      %50 = sbr.rel (0) target = $region49
    $region48: #{encode_and_prep.2} parent=1 // pred_region
      _
    $region49: #{encode_and_prep.2} parent=1 // pred_fallthru
      _
    // Predicated region
    $region50: #{encode_and_prep.2} parent=1 // pred_check
      _
    $region51: #{encode_and_prep.2} parent=1 // pred_check_branch
      %52 = sbr.rel (0) target = $region53
    $region52: #{encode_and_prep.2} parent=1 // pred_region
      _
    $region53: #{encode_and_prep.2} parent=1 // pred_fallthru
      _
    // Predicated region
    $region54: #{encode_and_prep.2} parent=1 // pred_check
      _
    $region55: #{encode_and_prep.2} parent=1 // pred_check_branch
      %54 = sbr.rel (0) target = $region57
    $region56: #{encode_and_prep.2} parent=1 // pred_region
      _
    $region57: #{encode_and_prep.2} parent=1 // pred_fallthru
      _
    // Predicated region
    $region58: #{encode_and_prep.2} parent=1 // pred_check
      _
    $region59: #{encode_and_prep.2} parent=1 // pred_check_branch
      %56 = sbr.rel (0) target = $region61
    $region60: #{encode_and_prep.2} parent=1 // pred_region
      _
    $region61: #{encode_and_prep.2} parent=1 // pred_fallthru
      _
    // Predicated region
    $region62: #{encode_and_prep.2} parent=1 // pred_check
      _
    $region63: #{encode_and_prep.2} parent=1 // pred_check_branch
      %58 = sbr.rel (0) target = $region65
    $region64: #{encode_and_prep.2} parent=1 // pred_region
      _
    $region65: #{encode_and_prep.2} parent=1 // pred_fallthru
      _
    // Predicated region
    $region66: #{encode_and_prep.2} parent=1 // pred_check
      _
    $region67: #{encode_and_prep.2} parent=1 // pred_check_branch
      %60 = sbr.rel (0) target = $region69
    $region68: #{encode_and_prep.2} parent=1 // pred_region
      _
    $region69: #{encode_and_prep.2} parent=1 // pred_fallthru
      _
    // Predicated region
    $region70: #{encode_and_prep.2} parent=1 // pred_check
      _
    $region71: #{encode_and_prep.2} parent=1 // pred_check_branch
      %62 = sbr.rel (0) target = $region73
    $region72: #{encode_and_prep.2} parent=1 // pred_region
      _
    $region73: #{encode_and_prep.2} parent=1 // pred_fallthru
      _
    %v64 = vld [vmem:[%s0] sm:$0xff]
    %v65 = vld [vmem:[%s0 + $0x8] sm:$0xff]
    %v66 = vld [vmem:[%s4] sm:$0x1]
    %v67 = vld [vmem:[%s5] sm:$0x1]
    %vm68 = vcmask 261120
    %v69 = vsel %vm68, %v64, 0.0
    %70 = vadd.xlane.f32.xlu0 %v69
    %v71 = vpop.xlane.xlu0 %70
    %v72 = vsel %vm68, %v65, 0.0
    %73 = vadd.xlane.f32.xlu0 %v72
    %v74 = vpop.xlane.xlu0 %73
    %v75 = vrcp.pop 32.0
    %v76 = vmul.f32 32.0, %v75
    %v77 = vsub.f32 1.0, %v76
    %v78 = vmul.f32 %v75, %v77
    %v79 = vadd.f32 %v75, %v78
    %vm80 = vweird.f32 %v75
    %v81 = vsel %vm80, %v75, %v79
    %v82 = vmul.f32 %v71, %v81
    %v83 = vmul.f32 %v74, %v81
    %v84 = vsub.f32 %v64, %v82
    %v85 = vsub.f32 %v65, %v83
    %v86 = vmul.f32 %v84, %v84
    %v87 = vmul.f32 %v85, %v85
    %v88 = vsel %vm68, %v86, 0.0
    %89 = vadd.xlane.f32.xlu0 %v88
    %v90 = vpop.xlane.xlu0 %89
    %v91 = vsel %vm68, %v87, 0.0
    %92 = vadd.xlane.f32.xlu0 %v91
    %v93 = vpop.xlane.xlu0 %92
    %v94 = vmul.f32 %v90, %v81
    %v95 = vmul.f32 %v93, %v81
    %v96 = vadd.f32 %v94, 1e-07
    %v97 = vadd.f32 %v95, 1e-07
    %v98 = vrsqrt.pop %v96
    %v99 = vmul.f32 %v98, %v96
    %v100 = vmul.f32 %v99, %v98
    %v101 = vmul.f32 0.5, %v100
    %v102 = vsub.f32 1.5, %v101
    %v103 = vmul.f32 %v98, %v102
    %vm104 = vweird.f32 %v96
    %vm105 = vweird.f32 %v98
    %vm106 = vmor %vm104, %vm105
    %v107 = vsel %vm106, %v98, %v103
    %v108 = vrsqrt.pop %v97
    %v109 = vmul.f32 %v108, %v97
    %v110 = vmul.f32 %v109, %v108
    %v111 = vmul.f32 0.5, %v110
    %v112 = vsub.f32 1.5, %v111
    %v113 = vmul.f32 %v108, %v112
    %vm114 = vweird.f32 %v97
    %vm115 = vweird.f32 %v108
    %vm116 = vmor %vm114, %vm115
    %v117 = vsel %vm116, %v108, %v113
    %v118 = vmul.f32 %v84, %v107
    %v119 = vmul.f32 %v85, %v117
    %v121 = vperm.slane %v66, 0
    %v123 = vmul.f32 %v118, %v121
    %v124 = vmul.f32 %v119, %v121
    %v126 = vperm.slane %v67, 0
    %v128 = vadd.f32 %v123, %v126
    %v129 = vadd.f32 %v124, %v126
    %v130 = vpack.c.bf16 %v129, %v128
    %v131 = vld [vmem:[%s6] sm:$0xf]
    %v132 = vld [vmem:[%s6 + $0x4] sm:$0xf]
    %v133 = vld [vmem:[%s6 + $0x8] sm:$0xf]
    %v134 = vld [vmem:[%s6 + $0xc] sm:$0xf]
    %v135 = vld [vmem:[%s7] sm:$0x1]
    %v137 = vperm.slane %v135, 0
    %v143 = vunpack.c.l.b16 %v131
    %v144 = vunpack.c.l.b16 %v132
    %v145 = vunpack.c.l.b16 %v133
    %v146 = vunpack.c.l.b16 %v134
    %v147 = vpack.c.b16 %v144, %v143
    %v148 = vpack.c.b16 %v146, %v145
    %v152 = vsel %vm68, %v130, 0
    %154 = vmatpush.bf16.msra.mxu0 0
    %155 = vmatpush.bf16.msra.mxu0 0
    %156 = vmatpush.bf16.msra.mxu0 0
    %157 = vmatpush.bf16.msra.mxu0 0
    %158 = vmatpush.bf16.msra.mxu0 0
    %159 = vmatpush.bf16.msra.mxu0 0
    %160 = vmatpush.bf16.msra.mxu0 %v148
    %161 = vmatpush.bf16.msra.mxu0 %v147
    %162 = vmatmul.bf16.gmra.mxu0 %v152
    %v163 = vpop.f32.mrf.mxu0
    %v164 = vadd.f32 %v137, %v163
    %v165 = vpop.f32.mrf.mxu0
    %v166 = vadd.f32 %v137, %v165
    %167 = vdwg.mxu0
    %v168 = vld [vmem:[%s1] sm:$0x1]
    %v169 = vpack.c.bf16 %v164, %v164
    %171 = vrot.lane.b32.xlu0 %v169, 96
    %v172 = vpop.permute.xlu0 %171
    %vm173 = vcmask 130048
    %v175 = vsel %vm173, %v169, 0
    %v178 = vsel %vm173, %v172, 0
    %180 = vmatpush.bf16.xpose.msra.mxu0 0
    %181 = vmatpush.bf16.xpose.msra.mxu0 0
    %182 = vmatpush.bf16.xpose.msra.mxu0 0
    %183 = vmatpush.bf16.xpose.msra.mxu0 0
    %184 = vmatpush.bf16.xpose.msra.mxu0 0
    %185 = vmatpush.bf16.xpose.msra.mxu0 0
    %186 = vmatpush.bf16.xpose.msra.mxu0 0
    %187 = vmatpush.bf16.xpose.msra.mxu0 %v178
    %188 = vmatmul.bf16.gmra.mxu0 %v175
    %v189 = vpop.f32.mrf.mxu0
    %v190 = vadd.f32 0.0, %v189
    %v191 = vpop.f32.mrf.mxu0
    %192 = vdwg.mxu0
    %v193 = vmul.f32 %v190, 0.25
    %v194 = vperm.slane %v168, 0
    %v195 = vadd.f32 %v193, %v194
    %vm196 = vcmask 64512
    %v197 = vsel %vm196, %v195, -inf
    %198 = vmax.xlane.f32.xlu0 %v197
    %v199 = vpop.xlane.xlu0 %198
    %v200 = vsub.f32 %v195, %v199
    %v201 = vmul.f32 %v200, 1.442695
    %v202 = vpow.pop %v201
    %v203 = vsel %vm196, %v202, 0.0
    %204 = vadd.xlane.f32.xlu0 %v203
    %v205 = vpop.xlane.xlu0 %204
    %v206 = vrcp.pop %v205
    %v207 = vmul.f32 %v205, %v206
    %v208 = vsub.f32 1.0, %v207
    %v209 = vmul.f32 %v206, %v208
    %v210 = vadd.f32 %v206, %v209
    %vm211 = vweird.f32 %v205
    %vm212 = vweird.f32 %v206
    %vm213 = vmor %vm211, %vm212
    %v214 = vsel %vm213, %v206, %v210
    %v215 = vand.u32 2147483647, %v205
    %vm216 = vcmp.eq.f32.partialorder %v215, 8.507059e+37
    %v217 = vand.u32 %v205, 2147483648
    %v218 = vor.u32 1.1754944e-38, %v217
    %v219 = vsel %vm216, %v218, %v214
    %v220 = vmul.f32 %v202, %v219
    %v221 = vpack.c.bf16 %v220, %v220
    %222 = vrot.lane.b32.xlu0 %v169, 64
    %v223 = vpop.permute.xlu0 %222
    %v225 = vsel %vm196, %v221, 0
    %vm227 = vcmask 1043456
    %v229 = vsel %vm227, %v223, 0
    %231 = vmatpush.bf16.msra.mxu0 0
    %232 = vmatpush.bf16.msra.mxu0 0
    %233 = vmatpush.bf16.msra.mxu0 0
    %234 = vmatpush.bf16.msra.mxu0 0
    %235 = vmatpush.bf16.msra.mxu0 0
    %236 = vmatpush.bf16.msra.mxu0 0
    %237 = vmatpush.bf16.msra.mxu0 0
    %238 = vmatpush.bf16.msra.mxu0 %v229
    %239 = vmatmul.bf16.gmra.mxu0 %v225
    %v240 = vpop.f32.mrf.mxu0
    %v241 = vadd.f32 0.0, %v240
    %v242 = vpop.f32.mrf.mxu0
    %243 = vdwg.mxu0
    %244 = vst.msk [vmem:[#allocation2] sm:$0xff] %vm173, %v241
    %245 = vrot.lane.b32.xlu0 %v169, 112
    %v246 = vpop.permute.xlu0 %245
    %247 = vrot.lane.b32.xlu0 %v169, 80
    %v248 = vpop.permute.xlu0 %247
    %v250 = vsel %vm173, %v246, 0
    %v253 = vsel %vm173, %v248, 0
    %255 = vmatpush.bf16.xpose.msra.mxu0 0
    %256 = vmatpush.bf16.xpose.msra.mxu0 0
    %257 = vmatpush.bf16.xpose.msra.mxu0 0
    %258 = vmatpush.bf16.xpose.msra.mxu0 0
    %259 = vmatpush.bf16.xpose.msra.mxu0 0
    %260 = vmatpush.bf16.xpose.msra.mxu0 0
    %261 = vmatpush.bf16.xpose.msra.mxu0 0
    %262 = vmatpush.bf16.xpose.msra.mxu0 %v253
    %263 = vmatmul.bf16.gmra.mxu0 %v250
    %v264 = vpop.f32.mrf.mxu0
    %v265 = vadd.f32 0.0, %v264
    %v266 = vpop.f32.mrf.mxu0
    %267 = vdwg.mxu0
    %v268 = vmul.f32 %v265, 0.25
    %v269 = vadd.f32 %v268, %v194
    %v270 = vsel %vm196, %v269, -inf
    %271 = vmax.xlane.f32.xlu0 %v270
    %v272 = vpop.xlane.xlu0 %271
    %v273 = vsub.f32 %v269, %v272
    %v274 = vmul.f32 %v273, 1.442695
    %v275 = vpow.pop %v274
    %v276 = vsel %vm196, %v275, 0.0
    %277 = vadd.xlane.f32.xlu0 %v276
    %v278 = vpop.xlane.xlu0 %277
    %v279 = vrcp.pop %v278
    %v280 = vmul.f32 %v278, %v279
    %v281 = vsub.f32 1.0, %v280
    %v282 = vmul.f32 %v279, %v281
    %v283 = vadd.f32 %v279, %v282
    %vm284 = vweird.f32 %v278
    %vm285 = vweird.f32 %v279
    %vm286 = vmor %vm284, %vm285
    %v287 = vsel %vm286, %v279, %v283
    %v288 = vand.u32 2147483647, %v278
    %vm289 = vcmp.eq.f32.partialorder %v288, 8.507059e+37
    %v290 = vand.u32 %v278, 2147483648
    %v291 = vor.u32 1.1754944e-38, %v290
    %v292 = vsel %vm289, %v291, %v287
    %v293 = vmul.f32 %v275, %v292
    %v294 = vpack.c.bf16 %v293, %v293
    %295 = vrot.lane.b32.xlu0 %v169, 48
    %v296 = vpop.permute.xlu0 %295
    %v298 = vsel %vm196, %v294, 0
    %v301 = vsel %vm227, %v296, 0
    %303 = vmatpush.bf16.msra.mxu0 0
    %304 = vmatpush.bf16.msra.mxu0 0
    %305 = vmatpush.bf16.msra.mxu0 0
    %306 = vmatpush.bf16.msra.mxu0 0
    %307 = vmatpush.bf16.msra.mxu0 0
    %308 = vmatpush.bf16.msra.mxu0 0
    %309 = vmatpush.bf16.msra.mxu0 0
    %310 = vmatpush.bf16.msra.mxu0 %v301
    %311 = vmatmul.bf16.gmra.mxu0 %v298
    %v312 = vpop.f32.mrf.mxu0
    %v313 = vadd.f32 0.0, %v312
    %v314 = vpop.f32.mrf.mxu0
    %315 = vdwg.mxu0
    %317 = vrot.lane.b32.xlu0 %v313, 16
    %v318 = vpop.permute.xlu0 %317
    %vm320 = vcmask 261248
    %321 = vst.msk [vmem:[#allocation2] sm:$0xff] %vm320, %v318
    %v322 = vld [vmem:[%s1 + $0x1] sm:$0x1]
    %v323 = vpack.c.bf16 %v166, %v166
    %325 = vrot.lane.b32.xlu0 %v323, 96
    %v326 = vpop.permute.xlu0 %325
    %v328 = vsel %vm173, %v323, 0
    %v331 = vsel %vm173, %v326, 0
    %333 = vmatpush.bf16.xpose.msra.mxu0 0
    %334 = vmatpush.bf16.xpose.msra.mxu0 0
    %335 = vmatpush.bf16.xpose.msra.mxu0 0
    %336 = vmatpush.bf16.xpose.msra.mxu0 0
    %337 = vmatpush.bf16.xpose.msra.mxu0 0
    %338 = vmatpush.bf16.xpose.msra.mxu0 0
    %339 = vmatpush.bf16.xpose.msra.mxu0 0
    %340 = vmatpush.bf16.xpose.msra.mxu0 %v331
    %341 = vmatmul.bf16.gmra.mxu0 %v328
    %v342 = vpop.f32.mrf.mxu0
    %v343 = vadd.f32 0.0, %v342
    %v344 = vpop.f32.mrf.mxu0
    %345 = vdwg.mxu0
    %v346 = vmul.f32 %v343, 0.25
    %v347 = vperm.slane %v322, 0
    %v348 = vadd.f32 %v346, %v347
    %v349 = vsel %vm196, %v348, -inf
    %350 = vmax.xlane.f32.xlu0 %v349
    %v351 = vpop.xlane.xlu0 %350
    %v352 = vsub.f32 %v348, %v351
    %v353 = vmul.f32 %v352, 1.442695
    %v354 = vpow.pop %v353
    %v355 = vsel %vm196, %v354, 0.0
    %356 = vadd.xlane.f32.xlu0 %v355
    %v357 = vpop.xlane.xlu0 %356
    %v358 = vrcp.pop %v357
    %v359 = vmul.f32 %v357, %v358
    %v360 = vsub.f32 1.0, %v359
    %v361 = vmul.f32 %v358, %v360
    %v362 = vadd.f32 %v358, %v361
    %vm363 = vweird.f32 %v357
    %vm364 = vweird.f32 %v358
    %vm365 = vmor %vm363, %vm364
    %v366 = vsel %vm365, %v358, %v362
    %v367 = vand.u32 2147483647, %v357
    %vm368 = vcmp.eq.f32.partialorder %v367, 8.507059e+37
    %v369 = vand.u32 %v357, 2147483648
    %v370 = vor.u32 1.1754944e-38, %v369
    %v371 = vsel %vm368, %v370, %v366
    %v372 = vmul.f32 %v354, %v371
    %v373 = vpack.c.bf16 %v372, %v372
    %374 = vrot.lane.b32.xlu0 %v323, 64
    %v375 = vpop.permute.xlu0 %374
    %v377 = vsel %vm196, %v373, 0
    %v380 = vsel %vm227, %v375, 0
    %382 = vmatpush.bf16.msra.mxu0 0
    %383 = vmatpush.bf16.msra.mxu0 0
    %384 = vmatpush.bf16.msra.mxu0 0
    %385 = vmatpush.bf16.msra.mxu0 0
    %386 = vmatpush.bf16.msra.mxu0 0
    %387 = vmatpush.bf16.msra.mxu0 0
    %388 = vmatpush.bf16.msra.mxu0 0
    %389 = vmatpush.bf16.msra.mxu0 %v380
    %390 = vmatmul.bf16.gmra.mxu0 %v377
    %v391 = vpop.f32.mrf.mxu0
    %v392 = vadd.f32 0.0, %v391
    %v393 = vpop.f32.mrf.mxu0
    %394 = vdwg.mxu0
    %395 = vst.msk [vmem:[#allocation2 + $0x8] sm:$0xff] %vm173, %v392
    %396 = vrot.lane.b32.xlu0 %v323, 112
    %v397 = vpop.permute.xlu0 %396
    %398 = vrot.lane.b32.xlu0 %v323, 80
    %v399 = vpop.permute.xlu0 %398
    %v401 = vsel %vm173, %v397, 0
    %v404 = vsel %vm173, %v399, 0
    %406 = vmatpush.bf16.xpose.msra.mxu0 0
    %407 = vmatpush.bf16.xpose.msra.mxu0 0
    %408 = vmatpush.bf16.xpose.msra.mxu0 0
    %409 = vmatpush.bf16.xpose.msra.mxu0 0
    %410 = vmatpush.bf16.xpose.msra.mxu0 0
    %411 = vmatpush.bf16.xpose.msra.mxu0 0
    %412 = vmatpush.bf16.xpose.msra.mxu0 0
    %413 = vmatpush.bf16.xpose.msra.mxu0 %v404
    %414 = vmatmul.bf16.gmra.mxu0 %v401
    %v415 = vpop.f32.mrf.mxu0
    %v416 = vadd.f32 0.0, %v415
    %v417 = vpop.f32.mrf.mxu0
    %418 = vdwg.mxu0
    %v419 = vmul.f32 %v416, 0.25
    %v420 = vadd.f32 %v419, %v347
    %v421 = vsel %vm196, %v420, -inf
    %422 = vmax.xlane.f32.xlu0 %v421
    %v423 = vpop.xlane.xlu0 %422
    %v424 = vsub.f32 %v420, %v423
    %v425 = vmul.f32 %v424, 1.442695
    %v426 = vpow.pop %v425
    %v427 = vsel %vm196, %v426, 0.0
    %428 = vadd.xlane.f32.xlu0 %v427
    %v429 = vpop.xlane.xlu0 %428
    %v430 = vrcp.pop %v429
    %v431 = vmul.f32 %v429, %v430
    %v432 = vsub.f32 1.0, %v431
    %v433 = vmul.f32 %v430, %v432
    %v434 = vadd.f32 %v430, %v433
    %vm435 = vweird.f32 %v429
    %vm436 = vweird.f32 %v430
    %vm437 = vmor %vm435, %vm436
    %v438 = vsel %vm437, %v430, %v434
    %v439 = vand.u32 2147483647, %v429
    %vm440 = vcmp.eq.f32.partialorder %v439, 8.507059e+37
    %v441 = vand.u32 %v429, 2147483648
    %v442 = vor.u32 1.1754944e-38, %v441
    %v443 = vsel %vm440, %v442, %v438
    %v444 = vmul.f32 %v426, %v443
    %v445 = vpack.c.bf16 %v444, %v444
    %446 = vrot.lane.b32.xlu0 %v323, 48
    %v447 = vpop.permute.xlu0 %446
    %v449 = vsel %vm196, %v445, 0
    %v452 = vsel %vm227, %v447, 0
    %454 = vmatpush.bf16.msra.mxu0 0
    %455 = vmatpush.bf16.msra.mxu0 0
    %456 = vmatpush.bf16.msra.mxu0 0
    %457 = vmatpush.bf16.msra.mxu0 0
    %458 = vmatpush.bf16.msra.mxu0 0
    %459 = vmatpush.bf16.msra.mxu0 0
    %460 = vmatpush.bf16.msra.mxu0 0
    %461 = vmatpush.bf16.msra.mxu0 %v452
    %462 = vmatmul.bf16.gmra.mxu0 %v449
    %v463 = vpop.f32.mrf.mxu0
    %v464 = vadd.f32 0.0, %v463
    %v465 = vpop.f32.mrf.mxu0
    %466 = vdwg.mxu0
    %468 = vrot.lane.b32.xlu0 %v464, 16
    %v469 = vpop.permute.xlu0 %468
    %471 = vst.msk [vmem:[#allocation2 + $0x8] sm:$0xff] %vm320, %v469
    %v472 = vld [vmem:[#allocation2] sm:$0xff]
    %v473 = vld [vmem:[#allocation2 + $0x8] sm:$0xff]
    %v474 = vpack.c.bf16 %v473, %v472
    %v475 = vld [vmem:[%s8] sm:$0xf]
    %v476 = vld [vmem:[%s8 + $0x4] sm:$0xf]
    %v477 = vld [vmem:[%s8 + $0x8] sm:$0xf]
    %v478 = vld [vmem:[%s8 + $0xc] sm:$0xf]
    %v479 = vld [vmem:[%s9] sm:$0x1]
    %v481 = vperm.slane %v479, 0
    %v487 = vunpack.c.l.b16 %v475
    %v488 = vunpack.c.l.b16 %v476
    %v489 = vunpack.c.l.b16 %v477
    %v490 = vunpack.c.l.b16 %v478
    %v491 = vpack.c.b16 %v488, %v487
    %v492 = vpack.c.b16 %v490, %v489
    %v496 = vsel %vm68, %v474, 0
    %498 = vmatpush.bf16.msra.mxu0 0
    %499 = vmatpush.bf16.msra.mxu0 0
    %500 = vmatpush.bf16.msra.mxu0 0
    %501 = vmatpush.bf16.msra.mxu0 0
    %502 = vmatpush.bf16.msra.mxu0 0
    %503 = vmatpush.bf16.msra.mxu0 0
    %504 = vmatpush.bf16.msra.mxu0 %v492
    %505 = vmatpush.bf16.msra.mxu0 %v491
    %506 = vmatmul.bf16.gmra.mxu0 %v496
    %v507 = vpop.f32.mrf.mxu0
    %v508 = vadd.f32 %v481, %v507
    %v509 = vpop.f32.mrf.mxu0
    %v510 = vadd.f32 %v481, %v509
    %511 = vdwg.mxu0
    %v512 = vadd.f32 %v128, %v508
    %v513 = vadd.f32 %v129, %v510
    %v514 = vld [vmem:[%s10] sm:$0x1]
    %v515 = vld [vmem:[%s11] sm:$0x1]
    %v516 = vsel %vm68, %v512, 0.0
    %517 = vadd.xlane.f32.xlu0 %v516
    %v518 = vpop.xlane.xlu0 %517
    %v519 = vsel %vm68, %v513, 0.0
    %520 = vadd.xlane.f32.xlu0 %v519
    %v521 = vpop.xlane.xlu0 %520
    %v522 = vmul.f32 %v518, %v81
    %v523 = vmul.f32 %v521, %v81
    %v524 = vsub.f32 %v512, %v522
    %v525 = vsub.f32 %v513, %v523
    %v526 = vmul.f32 %v524, %v524
    %v527 = vmul.f32 %v525, %v525
    %v528 = vsel %vm68, %v526, 0.0
    %529 = vadd.xlane.f32.xlu0 %v528
    %v530 = vpop.xlane.xlu0 %529
    %v531 = vsel %vm68, %v527, 0.0
    %532 = vadd.xlane.f32.xlu0 %v531
    %v533 = vpop.xlane.xlu0 %532
    %v534 = vmul.f32 %v530, %v81
    %v535 = vmul.f32 %v533, %v81
    %v536 = vadd.f32 %v534, 1e-07
    %v537 = vadd.f32 %v535, 1e-07
    %v538 = vrsqrt.pop %v536
    %v539 = vmul.f32 %v538, %v536
    %v540 = vmul.f32 %v539, %v538
    %v541 = vmul.f32 0.5, %v540
    %v542 = vsub.f32 1.5, %v541
    %v543 = vmul.f32 %v538, %v542
    %vm544 = vweird.f32 %v536
    %vm545 = vweird.f32 %v538
    %vm546 = vmor %vm544, %vm545
    %v547 = vsel %vm546, %v538, %v543
    %v548 = vrsqrt.pop %v537
    %v549 = vmul.f32 %v548, %v537
    %v550 = vmul.f32 %v549, %v548
    %v551 = vmul.f32 0.5, %v550
    %v552 = vsub.f32 1.5, %v551
    %v553 = vmul.f32 %v548, %v552
    %vm554 = vweird.f32 %v537
    %vm555 = vweird.f32 %v548
    %vm556 = vmor %vm554, %vm555
    %v557 = vsel %vm556, %v548, %v553
    %v558 = vmul.f32 %v524, %v547
    %v559 = vmul.f32 %v525, %v557
    %v561 = vperm.slane %v514, 0
    %v563 = vmul.f32 %v558, %v561
    %v564 = vmul.f32 %v559, %v561
    %v566 = vperm.slane %v515, 0
    %v568 = vadd.f32 %v563, %v566
    %v569 = vadd.f32 %v564, %v566
    %v570 = vpack.c.bf16 %v569, %v568
    %v571 = vld [vmem:[%s12] sm:$0xf]
    %v572 = vld [vmem:[%s12 + $0x4] sm:$0xf]
    %v573 = vld [vmem:[%s12 + $0x8] sm:$0xf]
    %v574 = vld [vmem:[%s12 + $0xc] sm:$0xf]
    %v575 = vld [vmem:[%s13] sm:$0x1]
    %v577 = vperm.slane %v575, 0
    %v583 = vunpack.c.l.b16 %v571
    %v584 = vunpack.c.l.b16 %v572
    %v585 = vunpack.c.l.b16 %v573
    %v586 = vunpack.c.l.b16 %v574
    %v587 = vpack.c.b16 %v584, %v583
    %v588 = vpack.c.b16 %v586, %v585
    %v592 = vsel %vm68, %v570, 0
    %594 = vmatpush.bf16.msra.mxu0 0
    %595 = vmatpush.bf16.msra.mxu0 0
    %596 = vmatpush.bf16.msra.mxu0 0
    %597 = vmatpush.bf16.msra.mxu0 0
    %598 = vmatpush.bf16.msra.mxu0 0
    %599 = vmatpush.bf16.msra.mxu0 0
    %600 = vmatpush.bf16.msra.mxu0 %v588
    %601 = vmatpush.bf16.msra.mxu0 %v587
    %602 = vmatmul.bf16.gmra.mxu0 %v592
    %v603 = vpop.f32.mrf.mxu0
    %v604 = vadd.f32 %v577, %v603
    %v605 = vpop.f32.mrf.mxu0
    %v606 = vadd.f32 %v577, %v605
    %607 = vdwg.mxu0
    %v608 = vmul.f32 %v604, %v604
    %v609 = vmul.f32 %v606, %v606
    %v610 = vmul.f32 %v604, %v608
    %v611 = vmul.f32 %v606, %v609
    %v612 = vmul.f32 %v610, 0.044715
    %v613 = vmul.f32 %v611, 0.044715
    %v614 = vadd.f32 %v604, %v612
    %v615 = vadd.f32 %v606, %v613
    %v616 = vmul.f32 %v614, 0.7978846
    %v617 = vmul.f32 %v615, 0.7978846
    %v618 = vtanh.pop %v616
    %v619 = vtanh.pop %v617
    %v620 = vadd.f32 %v618, 1.0
    %v621 = vadd.f32 %v619, 1.0
    %v622 = vmul.f32 %v620, 0.5
    %v623 = vmul.f32 %v621, 0.5
    %v624 = vmul.f32 %v604, %v622
    %v625 = vmul.f32 %v606, %v623
    %v626 = vpack.c.bf16 %v625, %v624
    %v627 = vld [vmem:[%s14] sm:$0xf]
    %v628 = vld [vmem:[%s14 + $0x4] sm:$0xf]
    %v629 = vld [vmem:[%s14 + $0x8] sm:$0xf]
    %v630 = vld [vmem:[%s14 + $0xc] sm:$0xf]
    %v631 = vld [vmem:[%s14 + $0x10] sm:$0xf]
    %v632 = vld [vmem:[%s14 + $0x14] sm:$0xf]
    %v633 = vld [vmem:[%s14 + $0x18] sm:$0xf]
    %v634 = vld [vmem:[%s14 + $0x1c] sm:$0xf]
    %v635 = vld [vmem:[%s15] sm:$0x1]
    %v637 = vperm.slane %v635, 0
    %v647 = vunpack.c.l.b16 %v627
    %v648 = vunpack.c.l.b16 %v628
    %v649 = vunpack.c.l.b16 %v629
    %v650 = vunpack.c.l.b16 %v630
    %v651 = vunpack.c.l.b16 %v631
    %v652 = vunpack.c.l.b16 %v632
    %v653 = vunpack.c.l.b16 %v633
    %v654 = vunpack.c.l.b16 %v634
    %v655 = vpack.c.b16 %v648, %v647
    %v656 = vpack.c.b16 %v650, %v649
    %v657 = vpack.c.b16 %v652, %v651
    %v658 = vpack.c.b16 %v654, %v653
    %vm663 = vcmask 523264
    %v665 = vsel %vm663, %v626, 0
    %667 = vmatpush.bf16.msra.mxu0 0
    %668 = vmatpush.bf16.msra.mxu0 0
    %669 = vmatpush.bf16.msra.mxu0 0
    %670 = vmatpush.bf16.msra.mxu0 0
    %671 = vmatpush.bf16.msra.mxu0 %v658
    %672 = vmatpush.bf16.msra.mxu0 %v657
    %673 = vmatpush.bf16.msra.mxu0 %v656
    %674 = vmatpush.bf16.msra.mxu0 %v655
    %675 = vmatmul.bf16.gmra.mxu0 %v665
    %v676 = vpop.f32.mrf.mxu0
    %v677 = vadd.f32 %v637, %v676
    %v678 = vpop.f32.mrf.mxu0
    %v679 = vadd.f32 %v637, %v678
    %680 = vdwg.mxu0
    %v681 = vadd.f32 %v568, %v677
    %v682 = vadd.f32 %v569, %v679
    %v683 = vld [vmem:[%s16] sm:$0x1]
    %v684 = vld [vmem:[%s17] sm:$0x1]
    %v685 = vsel %vm68, %v681, 0.0
    %686 = vadd.xlane.f32.xlu0 %v685
    %v687 = vpop.xlane.xlu0 %686
    %v688 = vsel %vm68, %v682, 0.0
    %689 = vadd.xlane.f32.xlu0 %v688
    %v690 = vpop.xlane.xlu0 %689
    %v691 = vmul.f32 %v687, %v81
    %v692 = vmul.f32 %v690, %v81
    %v693 = vsub.f32 %v681, %v691
    %v694 = vsub.f32 %v682, %v692
    %v695 = vmul.f32 %v693, %v693
    %v696 = vmul.f32 %v694, %v694
    %v697 = vsel %vm68, %v695, 0.0
    %698 = vadd.xlane.f32.xlu0 %v697
    %v699 = vpop.xlane.xlu0 %698
    %v700 = vsel %vm68, %v696, 0.0
    %701 = vadd.xlane.f32.xlu0 %v700
    %v702 = vpop.xlane.xlu0 %701
    %v703 = vmul.f32 %v699, %v81
    %v704 = vmul.f32 %v702, %v81
    %v705 = vadd.f32 %v703, 1e-07
    %v706 = vadd.f32 %v704, 1e-07
    %v707 = vrsqrt.pop %v705
    %v708 = vmul.f32 %v707, %v705
    %v709 = vmul.f32 %v708, %v707
    %v710 = vmul.f32 0.5, %v709
    %v711 = vsub.f32 1.5, %v710
    %v712 = vmul.f32 %v707, %v711
    %vm713 = vweird.f32 %v705
    %vm714 = vweird.f32 %v707
    %vm715 = vmor %vm713, %vm714
    %v716 = vsel %vm715, %v707, %v712
    %v717 = vrsqrt.pop %v706
    %v718 = vmul.f32 %v717, %v706
    %v719 = vmul.f32 %v718, %v717
    %v720 = vmul.f32 0.5, %v719
    %v721 = vsub.f32 1.5, %v720
    %v722 = vmul.f32 %v717, %v721
    %vm723 = vweird.f32 %v706
    %vm724 = vweird.f32 %v717
    %vm725 = vmor %vm723, %vm724
    %v726 = vsel %vm725, %v717, %v722
    %v727 = vmul.f32 %v693, %v716
    %v728 = vmul.f32 %v694, %v726
    %v730 = vperm.slane %v683, 0
    %v732 = vmul.f32 %v727, %v730
    %v733 = vmul.f32 %v728, %v730
    %v735 = vperm.slane %v684, 0
    %v737 = vadd.f32 %v732, %v735
    %v738 = vadd.f32 %v733, %v735
    %v739 = vpack.c.bf16 %v738, %v737
    %s740 = scalar_lea.vmem %s6, 16
    %v741 = vld [vmem:[%s740] sm:$0xf]
    %v742 = vld [vmem:[%s740 + $0x4] sm:$0xf]
    %v743 = vld [vmem:[%s740 + $0x8] sm:$0xf]
    %v744 = vld [vmem:[%s740 + $0xc] sm:$0xf]
    %s745 = scalar_lea.vmem %s7, 1
    %v746 = vld [vmem:[%s745] sm:$0x1]
    %v748 = vperm.slane %v746, 0
    %v754 = vunpack.c.l.b16 %v741
    %v755 = vunpack.c.l.b16 %v742
    %v756 = vunpack.c.l.b16 %v743
    %v757 = vunpack.c.l.b16 %v744
    %v758 = vpack.c.b16 %v755, %v754
    %v759 = vpack.c.b16 %v757, %v756
    %v763 = vsel %vm68, %v739, 0
    %765 = vmatpush.bf16.msra.mxu0 0
    %766 = vmatpush.bf16.msra.mxu0 0
    %767 = vmatpush.bf16.msra.mxu0 0
    %768 = vmatpush.bf16.msra.mxu0 0
    %769 = vmatpush.bf16.msra.mxu0 0
    %770 = vmatpush.bf16.msra.mxu0 0
    %771 = vmatpush.bf16.msra.mxu0 %v759
    %772 = vmatpush.bf16.msra.mxu0 %v758
    %773 = vmatmul.bf16.gmra.mxu0 %v763
    %v774 = vpop.f32.mrf.mxu0
    %v775 = vadd.f32 %v748, %v774
    %v776 = vpop.f32.mrf.mxu0
    %v777 = vadd.f32 %v748, %v776
    %778 = vdwg.mxu0
    %v779 = vld [vmem:[%s1] sm:$0x1]
    %v780 = vpack.c.bf16 %v775, %v775
    %782 = vrot.lane.b32.xlu0 %v780, 96
    %v783 = vpop.permute.xlu0 %782
    %v785 = vsel %vm173, %v780, 0
    %v788 = vsel %vm173, %v783, 0
    %790 = vmatpush.bf16.xpose.msra.mxu0 0
    %791 = vmatpush.bf16.xpose.msra.mxu0 0
    %792 = vmatpush.bf16.xpose.msra.mxu0 0
    %793 = vmatpush.bf16.xpose.msra.mxu0 0
    %794 = vmatpush.bf16.xpose.msra.mxu0 0
    %795 = vmatpush.bf16.xpose.msra.mxu0 0
    %796 = vmatpush.bf16.xpose.msra.mxu0 0
    %797 = vmatpush.bf16.xpose.msra.mxu0 %v788
    %798 = vmatmul.bf16.gmra.mxu0 %v785
    %v799 = vpop.f32.mrf.mxu0
    %v800 = vadd.f32 0.0, %v799
    %v801 = vpop.f32.mrf.mxu0
    %802 = vdwg.mxu0
    %v803 = vmul.f32 %v800, 0.25
    %v804 = vperm.slane %v779, 0
    %v805 = vadd.f32 %v803, %v804
    %v806 = vsel %vm196, %v805, -inf
    %807 = vmax.xlane.f32.xlu0 %v806
    %v808 = vpop.xlane.xlu0 %807
    %v809 = vsub.f32 %v805, %v808
    %v810 = vmul.f32 %v809, 1.442695
    %v811 = vpow.pop %v810
    %v812 = vsel %vm196, %v811, 0.0
    %813 = vadd.xlane.f32.xlu0 %v812
    %v814 = vpop.xlane.xlu0 %813
    %v815 = vrcp.pop %v814
    %v816 = vmul.f32 %v814, %v815
    %v817 = vsub.f32 1.0, %v816
    %v818 = vmul.f32 %v815, %v817
    %v819 = vadd.f32 %v815, %v818
    %vm820 = vweird.f32 %v814
    %vm821 = vweird.f32 %v815
    %vm822 = vmor %vm820, %vm821
    %v823 = vsel %vm822, %v815, %v819
    %v824 = vand.u32 2147483647, %v814
    %vm825 = vcmp.eq.f32.partialorder %v824, 8.507059e+37
    %v826 = vand.u32 %v814, 2147483648
    %v827 = vor.u32 1.1754944e-38, %v826
    %v828 = vsel %vm825, %v827, %v823
    %v829 = vmul.f32 %v811, %v828
    %v830 = vpack.c.bf16 %v829, %v829
    %831 = vrot.lane.b32.xlu0 %v780, 64
    %v832 = vpop.permute.xlu0 %831
    %v834 = vsel %vm196, %v830, 0
    %v837 = vsel %vm227, %v832, 0
    %839 = vmatpush.bf16.msra.mxu0 0
    %840 = vmatpush.bf16.msra.mxu0 0
    %841 = vmatpush.bf16.msra.mxu0 0
    %842 = vmatpush.bf16.msra.mxu0 0
    %843 = vmatpush.bf16.msra.mxu0 0
    %844 = vmatpush.bf16.msra.mxu0 0
    %845 = vmatpush.bf16.msra.mxu0 0
    %846 = vmatpush.bf16.msra.mxu0 %v837
    %847 = vmatmul.bf16.gmra.mxu0 %v834
    %v848 = vpop.f32.mrf.mxu0
    %v849 = vadd.f32 0.0, %v848
    %v850 = vpop.f32.mrf.mxu0
    %851 = vdwg.mxu0
    %852 = vst.msk [vmem:[#allocation2] sm:$0xff] %vm173, %v849
    %853 = vrot.lane.b32.xlu0 %v780, 112
    %v854 = vpop.permute.xlu0 %853
    %855 = vrot.lane.b32.xlu0 %v780, 80
    %v856 = vpop.permute.xlu0 %855
    %v858 = vsel %vm173, %v854, 0
    %v861 = vsel %vm173, %v856, 0
    %863 = vmatpush.bf16.xpose.msra.mxu0 0
    %864 = vmatpush.bf16.xpose.msra.mxu0 0
    %865 = vmatpush.bf16.xpose.msra.mxu0 0
    %866 = vmatpush.bf16.xpose.msra.mxu0 0
    %867 = vmatpush.bf16.xpose.msra.mxu0 0
    %868 = vmatpush.bf16.xpose.msra.mxu0 0
    %869 = vmatpush.bf16.xpose.msra.mxu0 0
    %870 = vmatpush.bf16.xpose.msra.mxu0 %v861
    %871 = vmatmul.bf16.gmra.mxu0 %v858
    %v872 = vpop.f32.mrf.mxu0
    %v873 = vadd.f32 0.0, %v872
    %v874 = vpop.f32.mrf.mxu0
    %875 = vdwg.mxu0
    %v876 = vmul.f32 %v873, 0.25
    %v877 = vadd.f32 %v876, %v804
    %v878 = vsel %vm196, %v877, -inf
    %879 = vmax.xlane.f32.xlu0 %v878
    %v880 = vpop.xlane.xlu0 %879
    %v881 = vsub.f32 %v877, %v880
    %v882 = vmul.f32 %v881, 1.442695
    %v883 = vpow.pop %v882
    %v884 = vsel %vm196, %v883, 0.0
    %885 = vadd.xlane.f32.xlu0 %v884
    %v886 = vpop.xlane.xlu0 %885
    %v887 = vrcp.pop %v886
    %v888 = vmul.f32 %v886, %v887
    %v889 = vsub.f32 1.0, %v888
    %v890 = vmul.f32 %v887, %v889
    %v891 = vadd.f32 %v887, %v890
    %vm892 = vweird.f32 %v886
    %vm893 = vweird.f32 %v887
    %vm894 = vmor %vm892, %vm893
    %v895 = vsel %vm894, %v887, %v891
    %v896 = vand.u32 2147483647, %v886
    %vm897 = vcmp.eq.f32.partialorder %v896, 8.507059e+37
    %v898 = vand.u32 %v886, 2147483648
    %v899 = vor.u32 1.1754944e-38, %v898
    %v900 = vsel %vm897, %v899, %v895
    %v901 = vmul.f32 %v883, %v900
    %v902 = vpack.c.bf16 %v901, %v901
    %903 = vrot.lane.b32.xlu0 %v780, 48
    %v904 = vpop.permute.xlu0 %903
    %v906 = vsel %vm196, %v902, 0
    %v909 = vsel %vm227, %v904, 0
    %911 = vmatpush.bf16.msra.mxu0 0
    %912 = vmatpush.bf16.msra.mxu0 0
    %913 = vmatpush.bf16.msra.mxu0 0
    %914 = vmatpush.bf16.msra.mxu0 0
    %915 = vmatpush.bf16.msra.mxu0 0
    %916 = vmatpush.bf16.msra.mxu0 0
    %917 = vmatpush.bf16.msra.mxu0 0
    %918 = vmatpush.bf16.msra.mxu0 %v909
    %919 = vmatmul.bf16.gmra.mxu0 %v906
    %v920 = vpop.f32.mrf.mxu0
    %v921 = vadd.f32 0.0, %v920
    %v922 = vpop.f32.mrf.mxu0
    %923 = vdwg.mxu0
    %925 = vrot.lane.b32.xlu0 %v921, 16
    %v926 = vpop.permute.xlu0 %925
    %928 = vst.msk [vmem:[#allocation2] sm:$0xff] %vm320, %v926
    %v929 = vld [vmem:[%s1 + $0x1] sm:$0x1]
    %v930 = vpack.c.bf16 %v777, %v777
    %932 = vrot.lane.b32.xlu0 %v930, 96
    %v933 = vpop.permute.xlu0 %932
    %v935 = vsel %vm173, %v930, 0
    %v938 = vsel %vm173, %v933, 0
    %940 = vmatpush.bf16.xpose.msra.mxu0 0
    %941 = vmatpush.bf16.xpose.msra.mxu0 0
    %942 = vmatpush.bf16.xpose.msra.mxu0 0
    %943 = vmatpush.bf16.xpose.msra.mxu0 0
    %944 = vmatpush.bf16.xpose.msra.mxu0 0
    %945 = vmatpush.bf16.xpose.msra.mxu0 0
    %946 = vmatpush.bf16.xpose.msra.mxu0 0
    %947 = vmatpush.bf16.xpose.msra.mxu0 %v938
    %948 = vmatmul.bf16.gmra.mxu0 %v935
    %v949 = vpop.f32.mrf.mxu0
    %v950 = vadd.f32 0.0, %v949
    %v951 = vpop.f32.mrf.mxu0
    %952 = vdwg.mxu0
    %v953 = vmul.f32 %v950, 0.25
    %v954 = vperm.slane %v929, 0
    %v955 = vadd.f32 %v953, %v954
    %v956 = vsel %vm196, %v955, -inf
    %957 = vmax.xlane.f32.xlu0 %v956
    %v958 = vpop.xlane.xlu0 %957
    %v959 = vsub.f32 %v955, %v958
    %v960 = vmul.f32 %v959, 1.442695
    %v961 = vpow.pop %v960
    %v962 = vsel %vm196, %v961, 0.0
    %963 = vadd.xlane.f32.xlu0 %v962
    %v964 = vpop.xlane.xlu0 %963
    %v965 = vrcp.pop %v964
    %v966 = vmul.f32 %v964, %v965
    %v967 = vsub.f32 1.0, %v966
    %v968 = vmul.f32 %v965, %v967
    %v969 = vadd.f32 %v965, %v968
    %vm970 = vweird.f32 %v964
    %vm971 = vweird.f32 %v965
    %vm972 = vmor %vm970, %vm971
    %v973 = vsel %vm972, %v965, %v969
    %v974 = vand.u32 2147483647, %v964
    %vm975 = vcmp.eq.f32.partialorder %v974, 8.507059e+37
    %v976 = vand.u32 %v964, 2147483648
    %v977 = vor.u32 1.1754944e-38, %v976
    %v978 = vsel %vm975, %v977, %v973
    %v979 = vmul.f32 %v961, %v978
    %v980 = vpack.c.bf16 %v979, %v979
    %981 = vrot.lane.b32.xlu0 %v930, 64
    %v982 = vpop.permute.xlu0 %981
    %v984 = vsel %vm196, %v980, 0
    %v987 = vsel %vm227, %v982, 0
    %989 = vmatpush.bf16.msra.mxu0 0
    %990 = vmatpush.bf16.msra.mxu0 0
    %991 = vmatpush.bf16.msra.mxu0 0
    %992 = vmatpush.bf16.msra.mxu0 0
    %993 = vmatpush.bf16.msra.mxu0 0
    %994 = vmatpush.bf16.msra.mxu0 0
    %995 = vmatpush.bf16.msra.mxu0 0
    %996 = vmatpush.bf16.msra.mxu0 %v987
    %997 = vmatmul.bf16.gmra.mxu0 %v984
    %v998 = vpop.f32.mrf.mxu0
    %v999 = vadd.f32 0.0, %v998
    %v1000 = vpop.f32.mrf.mxu0
    %1001 = vdwg.mxu0
    %1002 = vst.msk [vmem:[#allocation2 + $0x8] sm:$0xff] %vm173, %v999
    %1003 = vrot.lane.b32.xlu0 %v930, 112
    %v1004 = vpop.permute.xlu0 %1003
    %1005 = vrot.lane.b32.xlu0 %v930, 80
    %v1006 = vpop.permute.xlu0 %1005
    %v1008 = vsel %vm173, %v1004, 0
    %v1011 = vsel %vm173, %v1006, 0
    %1013 = vmatpush.bf16.xpose.msra.mxu0 0
    %1014 = vmatpush.bf16.xpose.msra.mxu0 0
    %1015 = vmatpush.bf16.xpose.msra.mxu0 0
    %1016 = vmatpush.bf16.xpose.msra.mxu0 0
    %1017 = vmatpush.bf16.xpose.msra.mxu0 0
    %1018 = vmatpush.bf16.xpose.msra.mxu0 0
    %1019 = vmatpush.bf16.xpose.msra.mxu0 0
    %1020 = vmatpush.bf16.xpose.msra.mxu0 %v1011
    %1021 = vmatmul.bf16.gmra.mxu0 %v1008
    %v1022 = vpop.f32.mrf.mxu0
    %v1023 = vadd.f32 0.0, %v1022
    %v1024 = vpop.f32.mrf.mxu0
    %1025 = vdwg.mxu0
    %v1026 = vmul.f32 %v1023, 0.25
    %v1027 = vadd.f32 %v1026, %v954
    %v1028 = vsel %vm196, %v1027, -inf
    %1029 = vmax.xlane.f32.xlu0 %v1028
    %v1030 = vpop.xlane.xlu0 %1029
    %v1031 = vsub.f32 %v1027, %v1030
    %v1032 = vmul.f32 %v1031, 1.442695
    %v1033 = vpow.pop %v1032
    %v1034 = vsel %vm196, %v1033, 0.0
    %1035 = vadd.xlane.f32.xlu0 %v1034
    %v1036 = vpop.xlane.xlu0 %1035
    %v1037 = vrcp.pop %v1036
    %v1038 = vmul.f32 %v1036, %v1037
    %v1039 = vsub.f32 1.0, %v1038
    %v1040 = vmul.f32 %v1037, %v1039
    %v1041 = vadd.f32 %v1037, %v1040
    %vm1042 = vweird.f32 %v1036
    %vm1043 = vweird.f32 %v1037
    %vm1044 = vmor %vm1042, %vm1043
    %v1045 = vsel %vm1044, %v1037, %v1041
    %v1046 = vand.u32 2147483647, %v1036
    %vm1047 = vcmp.eq.f32.partialorder %v1046, 8.507059e+37
    %v1048 = vand.u32 %v1036, 2147483648
    %v1049 = vor.u32 1.1754944e-38, %v1048
    %v1050 = vsel %vm1047, %v1049, %v1045
    %v1051 = vmul.f32 %v1033, %v1050
    %v1052 = vpack.c.bf16 %v1051, %v1051
    %1053 = vrot.lane.b32.xlu0 %v930, 48
    %v1054 = vpop.permute.xlu0 %1053
    %v1056 = vsel %vm196, %v1052, 0
    %v1059 = vsel %vm227, %v1054, 0
    %1061 = vmatpush.bf16.msra.mxu0 0
    %1062 = vmatpush.bf16.msra.mxu0 0
    %1063 = vmatpush.bf16.msra.mxu0 0
    %1064 = vmatpush.bf16.msra.mxu0 0
    %1065 = vmatpush.bf16.msra.mxu0 0
    %1066 = vmatpush.bf16.msra.mxu0 0
    %1067 = vmatpush.bf16.msra.mxu0 0
    %1068 = vmatpush.bf16.msra.mxu0 %v1059
    %1069 = vmatmul.bf16.gmra.mxu0 %v1056
    %v1070 = vpop.f32.mrf.mxu0
    %v1071 = vadd.f32 0.0, %v1070
    %v1072 = vpop.f32.mrf.mxu0
    %1073 = vdwg.mxu0
    %1075 = vrot.lane.b32.xlu0 %v1071, 16
    %v1076 = vpop.permute.xlu0 %1075
    %1078 = vst.msk [vmem:[#allocation2 + $0x8] sm:$0xff] %vm320, %v1076
    %v1079 = vld [vmem:[#allocation2] sm:$0xff]
    %v1080 = vld [vmem:[#allocation2 + $0x8] sm:$0xff]
    %v1081 = vpack.c.bf16 %v1080, %v1079
    %s1082 = scalar_lea.vmem %s8, 16
    %v1083 = vld [vmem:[%s1082] sm:$0xf]
    %v1084 = vld [vmem:[%s1082 + $0x4] sm:$0xf]
    %v1085 = vld [vmem:[%s1082 + $0x8] sm:$0xf]
    %v1086 = vld [vmem:[%s1082 + $0xc] sm:$0xf]
    %s1087 = scalar_lea.vmem %s9, 1
    %v1088 = vld [vmem:[%s1087] sm:$0x1]
    %v1090 = vperm.slane %v1088, 0
    %v1096 = vunpack.c.l.b16 %v1083
    %v1097 = vunpack.c.l.b16 %v1084
    %v1098 = vunpack.c.l.b16 %v1085
    %v1099 = vunpack.c.l.b16 %v1086
    %v1100 = vpack.c.b16 %v1097, %v1096
    %v1101 = vpack.c.b16 %v1099, %v1098
    %v1105 = vsel %vm68, %v1081, 0
    %1107 = vmatpush.bf16.msra.mxu0 0
    %1108 = vmatpush.bf16.msra.mxu0 0
    %1109 = vmatpush.bf16.msra.mxu0 0
    %1110 = vmatpush.bf16.msra.mxu0 0
    %1111 = vmatpush.bf16.msra.mxu0 0
    %1112 = vmatpush.bf16.msra.mxu0 0
    %1113 = vmatpush.bf16.msra.mxu0 %v1101
    %1114 = vmatpush.bf16.msra.mxu0 %v1100
    %1115 = vmatmul.bf16.gmra.mxu0 %v1105
    %v1116 = vpop.f32.mrf.mxu0
    %v1117 = vadd.f32 %v1090, %v1116
    %v1118 = vpop.f32.mrf.mxu0
    %v1119 = vadd.f32 %v1090, %v1118
    %1120 = vdwg.mxu0
    %v1121 = vadd.f32 %v737, %v1117
    %v1122 = vadd.f32 %v738, %v1119
    %s1123 = scalar_lea.vmem %s10, 1
    %v1124 = vld [vmem:[%s1123] sm:$0x1]
    %s1125 = scalar_lea.vmem %s11, 1
    %v1126 = vld [vmem:[%s1125] sm:$0x1]
    %v1127 = vsel %vm68, %v1121, 0.0
    %1128 = vadd.xlane.f32.xlu0 %v1127
    %v1129 = vpop.xlane.xlu0 %1128
    %v1130 = vsel %vm68, %v1122, 0.0
    %1131 = vadd.xlane.f32.xlu0 %v1130
    %v1132 = vpop.xlane.xlu0 %1131
    %v1133 = vmul.f32 %v1129, %v81
    %v1134 = vmul.f32 %v1132, %v81
    %v1135 = vsub.f32 %v1121, %v1133
    %v1136 = vsub.f32 %v1122, %v1134
    %v1137 = vmul.f32 %v1135, %v1135
    %v1138 = vmul.f32 %v1136, %v1136
    %v1139 = vsel %vm68, %v1137, 0.0
    %1140 = vadd.xlane.f32.xlu0 %v1139
    %v1141 = vpop.xlane.xlu0 %1140
    %v1142 = vsel %vm68, %v1138, 0.0
    %1143 = vadd.xlane.f32.xlu0 %v1142
    %v1144 = vpop.xlane.xlu0 %1143
    %v1145 = vmul.f32 %v1141, %v81
    %v1146 = vmul.f32 %v1144, %v81
    %v1147 = vadd.f32 %v1145, 1e-07
    %v1148 = vadd.f32 %v1146, 1e-07
    %v1149 = vrsqrt.pop %v1147
    %v1150 = vmul.f32 %v1149, %v1147
    %v1151 = vmul.f32 %v1150, %v1149
    %v1152 = vmul.f32 0.5, %v1151
    %v1153 = vsub.f32 1.5, %v1152
    %v1154 = vmul.f32 %v1149, %v1153
    %vm1155 = vweird.f32 %v1147
    %vm1156 = vweird.f32 %v1149
    %vm1157 = vmor %vm1155, %vm1156
    %v1158 = vsel %vm1157, %v1149, %v1154
    %v1159 = vrsqrt.pop %v1148
    %v1160 = vmul.f32 %v1159, %v1148
    %v1161 = vmul.f32 %v1160, %v1159
    %v1162 = vmul.f32 0.5, %v1161
    %v1163 = vsub.f32 1.5, %v1162
    %v1164 = vmul.f32 %v1159, %v1163
    %vm1165 = vweird.f32 %v1148
    %vm1166 = vweird.f32 %v1159
    %vm1167 = vmor %vm1165, %vm1166
    %v1168 = vsel %vm1167, %v1159, %v1164
    %v1169 = vmul.f32 %v1135, %v1158
    %v1170 = vmul.f32 %v1136, %v1168
    %v1172 = vperm.slane %v1124, 0
    %v1174 = vmul.f32 %v1169, %v1172
    %v1175 = vmul.f32 %v1170, %v1172
    %v1177 = vperm.slane %v1126, 0
    %v1179 = vadd.f32 %v1174, %v1177
    %v1180 = vadd.f32 %v1175, %v1177
    %v1181 = vpack.c.bf16 %v1180, %v1179
    %s1182 = scalar_lea.vmem %s12, 16
    %v1183 = vld [vmem:[%s1182] sm:$0xf]
    %v1184 = vld [vmem:[%s1182 + $0x4] sm:$0xf]
    %v1185 = vld [vmem:[%s1182 + $0x8] sm:$0xf]
    %v1186 = vld [vmem:[%s1182 + $0xc] sm:$0xf]
    %s1187 = scalar_lea.vmem %s13, 1
    %v1188 = vld [vmem:[%s1187] sm:$0x1]
    %v1190 = vperm.slane %v1188, 0
    %v1196 = vunpack.c.l.b16 %v1183
    %v1197 = vunpack.c.l.b16 %v1184
    %v1198 = vunpack.c.l.b16 %v1185
    %v1199 = vunpack.c.l.b16 %v1186
    %v1200 = vpack.c.b16 %v1197, %v1196
    %v1201 = vpack.c.b16 %v1199, %v1198
    %v1205 = vsel %vm68, %v1181, 0
    %1207 = vmatpush.bf16.msra.mxu0 0
    %1208 = vmatpush.bf16.msra.mxu0 0
    %1209 = vmatpush.bf16.msra.mxu0 0
    %1210 = vmatpush.bf16.msra.mxu0 0
    %1211 = vmatpush.bf16.msra.mxu0 0
    %1212 = vmatpush.bf16.msra.mxu0 0
    %1213 = vmatpush.bf16.msra.mxu0 %v1201
    %1214 = vmatpush.bf16.msra.mxu0 %v1200
    %1215 = vmatmul.bf16.gmra.mxu0 %v1205
    %v1216 = vpop.f32.mrf.mxu0
    %v1217 = vadd.f32 %v1190, %v1216
    %v1218 = vpop.f32.mrf.mxu0
    %v1219 = vadd.f32 %v1190, %v1218
    %1220 = vdwg.mxu0
    %v1221 = vmul.f32 %v1217, %v1217
    %v1222 = vmul.f32 %v1219, %v1219
    %v1223 = vmul.f32 %v1217, %v1221
    %v1224 = vmul.f32 %v1219, %v1222
    %v1225 = vmul.f32 %v1223, 0.044715
    %v1226 = vmul.f32 %v1224, 0.044715
    %v1227 = vadd.f32 %v1217, %v1225
    %v1228 = vadd.f32 %v1219, %v1226
    %v1229 = vmul.f32 %v1227, 0.7978846
    %v1230 = vmul.f32 %v1228, 0.7978846
    %v1231 = vtanh.pop %v1229
    %v1232 = vtanh.pop %v1230
    %v1233 = vadd.f32 %v1231, 1.0
    %v1234 = vadd.f32 %v1232, 1.0
    %v1235 = vmul.f32 %v1233, 0.5
    %v1236 = vmul.f32 %v1234, 0.5
    %v1237 = vmul.f32 %v1217, %v1235
    %v1238 = vmul.f32 %v1219, %v1236
    %v1239 = vpack.c.bf16 %v1238, %v1237
    %s1240 = scalar_lea.vmem %s14, 32
    %v1241 = vld [vmem:[%s1240] sm:$0xf]
    %v1242 = vld [vmem:[%s1240 + $0x4] sm:$0xf]
    %v1243 = vld [vmem:[%s1240 + $0x8] sm:$0xf]
    %v1244 = vld [vmem:[%s1240 + $0xc] sm:$0xf]
    %v1245 = vld [vmem:[%s1240 + $0x10] sm:$0xf]
    %v1246 = vld [vmem:[%s1240 + $0x14] sm:$0xf]
    %v1247 = vld [vmem:[%s1240 + $0x18] sm:$0xf]
    %v1248 = vld [vmem:[%s1240 + $0x1c] sm:$0xf]
    %s1249 = scalar_lea.vmem %s15, 1
    %v1250 = vld [vmem:[%s1249] sm:$0x1]
    %v1252 = vperm.slane %v1250, 0
    %v1262 = vunpack.c.l.b16 %v1241
    %v1263 = vunpack.c.l.b16 %v1242
    %v1264 = vunpack.c.l.b16 %v1243
    %v1265 = vunpack.c.l.b16 %v1244
    %v1266 = vunpack.c.l.b16 %v1245
    %v1267 = vunpack.c.l.b16 %v1246
    %v1268 = vunpack.c.l.b16 %v1247
    %v1269 = vunpack.c.l.b16 %v1248
    %v1270 = vpack.c.b16 %v1263, %v1262
    %v1271 = vpack.c.b16 %v1265, %v1264
    %v1272 = vpack.c.b16 %v1267, %v1266
    %v1273 = vpack.c.b16 %v1269, %v1268
    %v1279 = vsel %vm663, %v1239, 0
    %1281 = vmatpush.bf16.msra.mxu0 0
    %1282 = vmatpush.bf16.msra.mxu0 0
    %1283 = vmatpush.bf16.msra.mxu0 0
    %1284 = vmatpush.bf16.msra.mxu0 0
    %1285 = vmatpush.bf16.msra.mxu0 %v1273
    %1286 = vmatpush.bf16.msra.mxu0 %v1272
    %1287 = vmatpush.bf16.msra.mxu0 %v1271
    %1288 = vmatpush.bf16.msra.mxu0 %v1270
    %1289 = vmatmul.bf16.gmra.mxu0 %v1279
    %v1290 = vpop.f32.mrf.mxu0
    %v1291 = vadd.f32 %v1252, %v1290
    %v1292 = vpop.f32.mrf.mxu0
    %v1293 = vadd.f32 %v1252, %v1292
    %1294 = vdwg.mxu0
    %v1295 = vadd.f32 %v1179, %v1291
    %v1296 = vadd.f32 %v1180, %v1293
    %s1297 = scalar_lea.vmem %s16, 1
    %v1298 = vld [vmem:[%s1297] sm:$0x1]
    %s1299 = scalar_lea.vmem %s17, 1
    %v1300 = vld [vmem:[%s1299] sm:$0x1]
    %v1301 = vsel %vm68, %v1295, 0.0
    %1302 = vadd.xlane.f32.xlu0 %v1301
    %v1303 = vpop.xlane.xlu0 %1302
    %v1304 = vsel %vm68, %v1296, 0.0
    %1305 = vadd.xlane.f32.xlu0 %v1304
    %v1306 = vpop.xlane.xlu0 %1305
    %v1307 = vmul.f32 %v1303, %v81
    %v1308 = vmul.f32 %v1306, %v81
    %v1309 = vsub.f32 %v1295, %v1307
    %v1310 = vsub.f32 %v1296, %v1308
    %v1311 = vmul.f32 %v1309, %v1309
    %v1312 = vmul.f32 %v1310, %v1310
    %v1313 = vsel %vm68, %v1311, 0.0
    %1314 = vadd.xlane.f32.xlu0 %v1313
    %v1315 = vpop.xlane.xlu0 %1314
    %v1316 = vsel %vm68, %v1312, 0.0
    %1317 = vadd.xlane.f32.xlu0 %v1316
    %v1318 = vpop.xlane.xlu0 %1317
    %v1319 = vmul.f32 %v1315, %v81
    %v1320 = vmul.f32 %v1318, %v81
    %v1321 = vadd.f32 %v1319, 1e-07
    %v1322 = vadd.f32 %v1320, 1e-07
    %v1323 = vrsqrt.pop %v1321
    %v1324 = vmul.f32 %v1323, %v1321
    %v1325 = vmul.f32 %v1324, %v1323
    %v1326 = vmul.f32 0.5, %v1325
    %v1327 = vsub.f32 1.5, %v1326
    %v1328 = vmul.f32 %v1323, %v1327
    %vm1329 = vweird.f32 %v1321
    %vm1330 = vweird.f32 %v1323
    %vm1331 = vmor %vm1329, %vm1330
    %v1332 = vsel %vm1331, %v1323, %v1328
    %v1333 = vrsqrt.pop %v1322
    %v1334 = vmul.f32 %v1333, %v1322
    %v1335 = vmul.f32 %v1334, %v1333
    %v1336 = vmul.f32 0.5, %v1335
    %v1337 = vsub.f32 1.5, %v1336
    %v1338 = vmul.f32 %v1333, %v1337
    %vm1339 = vweird.f32 %v1322
    %vm1340 = vweird.f32 %v1333
    %vm1341 = vmor %vm1339, %vm1340
    %v1342 = vsel %vm1341, %v1333, %v1338
    %v1343 = vmul.f32 %v1309, %v1332
    %v1344 = vmul.f32 %v1310, %v1342
    %v1346 = vperm.slane %v1298, 0
    %v1348 = vmul.f32 %v1343, %v1346
    %v1349 = vmul.f32 %v1344, %v1346
    %v1351 = vperm.slane %v1300, 0
    %v1353 = vadd.f32 %v1348, %v1351
    %v1354 = vadd.f32 %v1349, %v1351
    %1355 = vst.msk [vmem:[%s18] sm:$0xff] %vm68, %v1353
    %1356 = vst.msk [vmem:[%s18 + $0x8] sm:$0xff] %vm68, %v1354
    %v1357 = vld [vmem:[%s2] sm:$0x3]
    %v1359 = vsel %vm173, %v1357, 0
    %1361 = vmatpush.msra.mxu0 0.0
    %1362 = vmatpush.msra.mxu0 0.0
    %1363 = vmatpush.msra.mxu0 0.0
    %1364 = vmatpush.msra.mxu0 0.0
    %1365 = vmatpush.msra.mxu0 0.0
    %1366 = vmatpush.msra.mxu0 0.0
    %1367 = vmatpush.msra.mxu0 0.0
    %1368 = vmatpush.msra.mxu0 0.0
    %1369 = vmatpush.msra.mxu0 0.0
    %1370 = vmatpush.msra.mxu0 0.0
    %1371 = vmatpush.msra.mxu0 0.0
    %1372 = vmatpush.msra.mxu0 0.0
    %1373 = vmatpush.msra.mxu0 0.0
    %1374 = vmatpush.msra.mxu0 0.0
    %1375 = vmatpush.msra.mxu0 %v1354
    %1376 = vmatpush.msra.mxu0 %v1353
    %1377 = vmatmul.f32.gmra.mxu0 %v1359
    %v1378 = vpop.f32.mrf.mxu0
    %v1379 = vadd.f32 0.0, %v1378
    %1380 = vdwg.mxu0
    %vm1381 = vcmask 254976
    %1382 = vst.msk [vmem:[#allocation3] sm:$0x3] %vm1381, %v1379
    %v1383 = vld [vmem:[%s3] sm:$0x3f]
    %v1385 = vsel %vm173, %v1383, 0
    %1387 = vmatpush.msra.mxu0 0.0
    %1388 = vmatpush.msra.mxu0 0.0
    %1389 = vmatpush.msra.mxu0 0.0
    %1390 = vmatpush.msra.mxu0 0.0
    %1391 = vmatpush.msra.mxu0 0.0
    %1392 = vmatpush.msra.mxu0 0.0
    %1393 = vmatpush.msra.mxu0 0.0
    %1394 = vmatpush.msra.mxu0 0.0
    %1395 = vmatpush.msra.mxu0 0.0
    %1396 = vmatpush.msra.mxu0 0.0
    %1397 = vmatpush.msra.mxu0 0.0
    %1398 = vmatpush.msra.mxu0 0.0
    %1399 = vmatpush.msra.mxu0 0.0
    %1400 = vmatpush.msra.mxu0 0.0
    %1401 = vmatpush.msra.mxu0 %v1354
    %1402 = vmatpush.msra.mxu0 %v1353
    %1403 = vmatmul.f32.gmra.mxu0 %v1385
    %v1404 = vpop.f32.mrf.mxu0
    %v1405 = vadd.f32 0.0, %v1404
    %1406 = vdwg.mxu0
    %vm1407 = vcmask 259072
    %1408 = vst.msk [vmem:[%s20] sm:$0x3f] %vm1407, %v1405
    // Predicated region
    $region74: #{encode_and_prep.2} parent=1 // pred_check
      _
    $region75: #{encode_and_prep.2} parent=1 // pred_check_branch
      %1410 = sbr.rel (0) target = $region77
    $region76: #{encode_and_prep.2} parent=1 // pred_region
      _
    $region77: #{encode_and_prep.2} parent=1 // pred_fallthru
      _
    // Predicated region
    $region78: #{encode_and_prep.2} parent=1 // pred_check
      _
    $region79: #{encode_and_prep.2} parent=1 // pred_check_branch
      %1412 = sbr.rel (0) target = $region81
    $region80: #{encode_and_prep.2} parent=1 // pred_region
      %1414 = vsyncadd [#allocation4], 0
      %s1416 = sshll.u32 [#allocation3], 4
      %s1417 = int_to_ptr.vmem [resolvable:$true] %s1416
      %s1418 = sshll.u32 %s19, 4
      %s1419 = int_to_ptr.hbm [resolvable:$true] %s1418
      %1421 = dma.vmem_to_hbm [thread:$0]  %s1417, 32, %s1419, [#allocation4]
    $region81: #{encode_and_prep.2} parent=1 // pred_fallthru
      _
    // Predicated region
    $region82: #{encode_and_prep.2} parent=1 // pred_check
      _
    $region83: #{encode_and_prep.2} parent=1 // pred_check_branch
      %1423 = sbr.rel (0) target = $region85
    $region84: #{encode_and_prep.2} parent=1 // pred_region
      _
    $region85: #{encode_and_prep.2} parent=1 // pred_fallthru
      _
    // Predicated region
    $region86: #{encode_and_prep.2} parent=1 // pred_check
      _
    $region87: #{encode_and_prep.2} parent=1 // pred_check_branch
      %1425 = sbr.rel (0) target = $region89
    $region88: #{encode_and_prep.2} parent=1 // pred_region
      _
    $region89: #{encode_and_prep.2} parent=1 // pred_fallthru
      _
    // Predicated region
    $region90: #{encode_and_prep.2} parent=1 // pred_check
      _
    $region91: #{encode_and_prep.2} parent=1 // pred_check_branch
      %1427 = sbr.rel (0) target = $region93
    $region92: #{encode_and_prep.2} parent=1 // pred_region
      %1429 = dma.done [#allocation4], 32
    $region93: #{encode_and_prep.2} parent=1 // pred_fallthru
      _
    // Predicated region
    $region94: #{encode_and_prep.2} parent=1 // pred_check
      _
    $region95: #{encode_and_prep.2} parent=1 // pred_check_branch
      %1431 = sbr.rel (0) target = $region97
    $region96: #{encode_and_prep.2} parent=1 // pred_region
      _
    $region97: #{encode_and_prep.2} parent=1 // pred_fallthru
      _
    %1432 = vsyncpa [#allocation4], 1

</llo_original>
